<compile_context>
chip_gen: v6e
topology: v6e:2x2x1
jax: 0.10.0
libtpu: 0.0.40
codegen_flags: <defaults>
</compile_context>

<pallas_src>
import jax
import jax.numpy as jnp
from jax import lax
from jax.experimental import pallas as pl
from jax.experimental.pallas import tpu as pltpu

# ----------------------------- config ---------------------------------------
PLAYER_NUM = 10
PLAYER_DIM = 16
TYPE_NUM = 12
TYPE_DIM = 32          # == HIDDEN (required by the reference module's shapes)
LOC_DIM = 32           # == HIDDEN
HIDDEN = 32
ENCODE_LEN = 4
MAX_LEN = 64
N_HEADS = 2
D_K = HIDDEN
D_V = HIDDEN
D_MODEL = HIDDEN
D_INNER = HIDDEN * 2
EPS = 1e-6

B = 2                  # batch
S = 8                  # decoder sequence length
S_ENC = 8              # encoder output length
BS = B * S             # rows after folding batch into the sublane axis

MXU_DTYPE = jnp.bfloat16   # matmul-operand dtype (accumulation always f32)

# ---- w32 slab row offsets (all sections 32-row aligned; zero-padded rows) ----
OFF_SCT = 0      # (2 ->32, 32)  self_coordination_transform
OFF_LP_L = 32    # (32,     32)  location_player, location part
OFF_LP_P = 64    # (16->32, 32)  location_player, player part
OFF_CT_A = 96    # (32,     32)  coordination_transform, player-A part
OFF_CT_B = 128   # (32,     32)  coordination_transform, player-B part
OFF_TP_T = 160   # (32,     32)  type_player, type part
OFF_TP_P = 192   # (16->32, 32)  type_player, player part
OFF_MIL_C = 224  # (32,     32)  model_input_linear, coordination part
OFF_MIL_T = 256  # (32,     32)  model_input_linear, type part
OFF_SWO = 288    # (64,     32)  self-attn output projection
OFF_CWO = 352    # (64,     32)  cross-attn output projection
OFF_FW2 = 416    # (64,     32)  FFN second linear
W32_ROWS = 480

# ---- bias rows (13 x 64, packed inside the activation slab) ----
BI_SCT, BI_LP, BI_CT, BI_TP, BI_MIL = 0, 1, 2, 3, 4
BI_SG, BI_SB, BI_CG, BI_CB = 5, 6, 7, 8
BI_FB1, BI_FB2, BI_FG, BI_FB = 9, 10, 11, 12

# ---- activation slab layout (64 rows x 128 lanes, f32; one DMA) ----
#   lanes   0: 32  rows  0:16 temb | 16:32 pos | 32:48 enc
#   lanes  32: 64  rows  0:32 xy (A rows 0:16, B rows 16:32; data in lanes 0:2)
#                  rows 32:64 additive mask, head-major (H*B*S, S), lanes 0:8
#   lanes  64: 96  rows  0:32 two_player emb (A then B; data in lanes 0:16)
#                  rows 32:48 player emb (data in lanes 0:16)
#   lanes  64:128  rows 48:61 bias/LN slab (13, 64)
ACT_ROWS, ACT_COLS = 64, 128


# --------------------------- kernel helpers ----------------------------------
def _layer_norm(x, g, b):
    mu = jnp.mean(x, axis=-1, keepdims=True)
    var = jnp.mean((x - mu) ** 2, axis=-1, keepdims=True)
    return (x - mu) * lax.rsqrt(var + EPS) * g + b


# ------------------------------ the kernel -----------------------------------
def transformer_decoder_kernel(act_ref, w32_ref, w192_ref, out_ref):
    f32 = jnp.float32

    def dot(a, b):                      # MXU matmul, bf16 operands, f32 accumulate
        return jnp.dot(a.astype(MXU_DTYPE), b.astype(MXU_DTYPE),
                       preferred_element_type=f32)

    def bdot(eq, a, b):                 # batched einsum, bf16 operands, f32 accumulate
        return jnp.einsum(eq, a.astype(MXU_DTYPE), b.astype(MXU_DTYPE),
                          preferred_element_type=f32)

    # ---- unpack the single activation slab ----
    act = act_ref[...]
    temb = act[0:16, 0:32]              # (BS, TYPE_DIM)
    pos = act[16:32, 0:32]              # (BS, TYPE_DIM)
    enc = act[32:48, 0:32]              # (B*S_ENC, D_MODEL)
    xy = act[0:32, 32:64]               # (2BS, 32): lanes 0:2 = coords, rest 0
    mask_add = act[32:64, 32:40]        # (H*B*S, S) additive self-attn mask
    twop = act[0:32, 64:96]             # (2BS, 32): lanes 0:16 = player emb
    pemb = act[32:48, 64:96]            # (BS, 32): lanes 0:16 = player emb
    bias = act[48:61, 64:128]           # (13, 64)

    def bvec(i, n=HIDDEN):
        return bias[i:i + 1, 0:n]

    # ---- cross-attn K/V projection hoisted (depends only on encoder output) ----
    kv_c = dot(enc, w192_ref[32:64, 64:192])              # (B*S_ENC, 2*H*Dk)

    # ---- input projections (batch folded into sublanes; concats -> split matmuls) ----
    coords = jnp.maximum(dot(xy, w32_ref[OFF_SCT:OFF_SCT + 32, :]) + bvec(BI_SCT), 0.0)
    loc = (dot(coords, w32_ref[OFF_LP_L:OFF_LP_L + 32, :])
           + dot(twop, w32_ref[OFF_LP_P:OFF_LP_P + 32, :])
           + bvec(BI_LP))                                  # (2BS, HIDDEN)
    coord_t = (dot(loc[0:BS], w32_ref[OFF_CT_A:OFF_CT_A + 32, :])
               + dot(loc[BS:2 * BS], w32_ref[OFF_CT_B:OFF_CT_B + 32, :])
               + bvec(BI_CT) + pos)                        # (BS, LOC_DIM)
    type_h = (dot(temb, w32_ref[OFF_TP_T:OFF_TP_T + 32, :])
              + dot(pemb, w32_ref[OFF_TP_P:OFF_TP_P + 32, :])
              + bvec(BI_TP) + pos)                         # (BS, HIDDEN)
    dec = (dot(coord_t, w32_ref[OFF_MIL_C:OFF_MIL_C + 32, :])
           + dot(type_h, w32_ref[OFF_MIL_T:OFF_MIL_T + 32, :])
           + bvec(BI_MIL))                                 # (BS, D_MODEL)

    # ---- head-batched multi-head attention, post-LN residual ----
    # TODO(synk): verify post-LN vs pre-LN and bias-free Q/K/V/O projections against
    # the exact revision of the repo's DecoderLayer/MultiHeadAttention.
    scale = 1.0 / (D_K ** 0.5)

    def split_heads(y, col0, seq_len):
        # (B*L, >= col0 + H*Dk) -> (H*B, L, Dk), head-major batch
        return jnp.concatenate(
            [y[:, col0 + h * D_K: col0 + (h + 1) * D_K].reshape(B, seq_len, D_K)
             for h in range(N_HEADS)], axis=0)

    def attention(q4, k4, v4, m_add, wo_off, residual, g, beta):
        s = bdot('bqd,bkd->bqk', q4, k4) * scale           # (H*B, S, Lk)
        if m_add is not None:
            s = s + m_add                                  # additive mask
        s = s - jnp.max(s, axis=-1, keepdims=True)
        p = jnp.exp(s)
        p = p * pl.reciprocal(jnp.sum(p, axis=-1, keepdims=True), approx=True)
        ctx = bdot('bqk,bkd->bqd', p, v4)                  # (H*B, S, Dv)
        ctx2 = jnp.concatenate(                            # (BS, H*Dv)
            [ctx[h * B:(h + 1) * B].reshape(BS, D_V) for h in range(N_HEADS)], axis=1)
        out = residual + dot(ctx2, w32_ref[wo_off:wo_off + N_HEADS * D_V, :])
        return _layer_norm(out, g, beta)

    # self attention (fused QKV projection)
    qkv = dot(dec, w192_ref[0:32, :])                      # (BS, 3*H*Dk)
    m3 = mask_add.reshape(N_HEADS * B, S, S)
    x = attention(split_heads(qkv, 0, S),
                  split_heads(qkv, N_HEADS * D_K, S),
                  split_heads(qkv, 2 * N_HEADS * D_K, S),
                  m3, OFF_SWO, dec, bvec(BI_SG), bvec(BI_SB))

    # cross attention (K/V projected above; reference forward passes no dec-enc mask)
    q_c = dot(x, w192_ref[32:64, 0:N_HEADS * D_K])         # (BS, H*Dk)
    x = attention(split_heads(q_c, 0, S),
                  split_heads(kv_c, 0, S_ENC),
                  split_heads(kv_c, N_HEADS * D_K, S_ENC),
                  None, OFF_CWO, x, bvec(BI_CG), bvec(BI_CB))

    # ---- position-wise FFN, post-LN residual ----
    h1 = jnp.maximum(dot(x, w192_ref[64:96, 0:D_INNER])
                     + bias[BI_FB1:BI_FB1 + 1, 0:D_INNER], 0.0)
    h2 = dot(h1, w32_ref[OFF_FW2:OFF_FW2 + 64, :]) + bvec(BI_FB2)
    x = _layer_norm(h2 + x, bvec(BI_FG), bvec(BI_FB))

    out_ref[...] = x.astype(out_ref.dtype)


# ------------------------------- parameters -----------------------------------
def make_params(key):
    ks = jax.random.split(key, 32)
    n = lambda k, shape, s=0.05: (jax.random.normal(k, shape, jnp.float32) * s)
    params = {
        "player_emb_table": n(ks[0], (PLAYER_NUM, PLAYER_DIM), 0.1),
        "type_emb_table": n(ks[1], (TYPE_NUM, TYPE_DIM), 0.1),
        "w_sct": n(ks[2], (2, LOC_DIM)),          "b_sct": n(ks[3], (1, LOC_DIM)),
        "w_lp": n(ks[4], (LOC_DIM + PLAYER_DIM, HIDDEN)), "b_lp": n(ks[5], (1, HIDDEN)),
        "w_ct": n(ks[6], (2 * LOC_DIM, LOC_DIM)), "b_ct": n(ks[7], (1, LOC_DIM)),
        "w_tp": n(ks[8], (TYPE_DIM + PLAYER_DIM, HIDDEN)), "b_tp": n(ks[9], (1, HIDDEN)),
        "w_mil": n(ks[10], (LOC_DIM + TYPE_DIM, HIDDEN)),  "b_mil": n(ks[11], (1, HIDDEN)),
        "s_wq": n(ks[12], (D_MODEL, N_HEADS * D_K)), "s_wk": n(ks[13], (D_MODEL, N_HEADS * D_K)),
        "s_wv": n(ks[14], (D_MODEL, N_HEADS * D_V)), "s_wo": n(ks[15], (N_HEADS * D_V, D_MODEL)),
        "s_g": jnp.ones((1, D_MODEL), jnp.float32), "s_b": jnp.zeros((1, D_MODEL), jnp.float32),
        "c_wq": n(ks[16], (D_MODEL, N_HEADS * D_K)), "c_wk": n(ks[17], (D_MODEL, N_HEADS * D_K)),
        "c_wv": n(ks[18], (D_MODEL, N_HEADS * D_V)), "c_wo": n(ks[19], (N_HEADS * D_V, D_MODEL)),
        "c_g": jnp.ones((1, D_MODEL), jnp.float32), "c_b": jnp.zeros((1, D_MODEL), jnp.float32),
        "f_w1": n(ks[20], (D_MODEL, D_INNER)), "f_b1": n(ks[21], (1, D_INNER)),
        "f_w2": n(ks[22], (D_INNER, D_MODEL)), "f_b2": n(ks[23], (1, D_MODEL)),
        "f_g": jnp.ones((1, D_MODEL), jnp.float32), "f_b": jnp.zeros((1, D_MODEL), jnp.float32),
    }
    # sinusoidal positional table (same formula as the repo's PositionalEncoding)
    position = jnp.arange(MAX_LEN, dtype=jnp.float32)[:, None]
    idx = jnp.arange(TYPE_DIM)
    denom = jnp.power(10000.0, (2.0 * (idx // 2).astype(jnp.float32)) / TYPE_DIM)
    angles = position / denom[None, :]
    params["pos_table"] = jnp.where(idx[None, :] % 2 == 0, jnp.sin(angles), jnp.cos(angles))
    return params


# ----------------------------- packing helpers --------------------------------
def _pack_weights(params):
    """Two bf16 slabs: (480,32) for 32-wide-output matmuls, (96,192) for QKV/FFN."""
    def pad_rows(w, rows):
        return jnp.pad(w, ((0, rows - w.shape[0]), (0, 0)))

    w32 = jnp.concatenate([
        pad_rows(params["w_sct"], 32),            # OFF_SCT   (zero rows 2:32)
        params["w_lp"][0:LOC_DIM],                # OFF_LP_L
        pad_rows(params["w_lp"][LOC_DIM:], 32),   # OFF_LP_P  (zero rows 16:32)
        params["w_ct"][0:LOC_DIM],                # OFF_CT_A
        params["w_ct"][LOC_DIM:],                 # OFF_CT_B
        params["w_tp"][0:TYPE_DIM],               # OFF_TP_T
        pad_rows(params["w_tp"][TYPE_DIM:], 32),  # OFF_TP_P  (zero rows 16:32)
        params["w_mil"][0:LOC_DIM],               # OFF_MIL_C
        params["w_mil"][LOC_DIM:],                # OFF_MIL_T
        params["s_wo"], params["c_wo"], params["f_w2"],
    ], axis=0)
    assert w32.shape == (W32_ROWS, HIDDEN)

    s_wqkv = jnp.concatenate([params["s_wq"], params["s_wk"], params["s_wv"]], axis=1)
    c_wqkv = jnp.concatenate([params["c_wq"], params["c_wk"], params["c_wv"]], axis=1)
    f_w1p = jnp.pad(params["f_w1"], ((0, 0), (0, 3 * N_HEADS * D_K - D_INNER)))
    w192 = jnp.concatenate([s_wqkv, c_wqkv, f_w1p], axis=0)
    assert w192.shape == (96, 3 * N_HEADS * D_K)
    return w32.astype(MXU_DTYPE), w192.astype(MXU_DTYPE)


def _pack_activations(params, player, a_x, a_y, b_x, b_y, shot_type,
                      encoder_output, two_player):
    """One lane-dense (64,128) f32 slab holding every activation operand + biases."""
    B_, S_ = player.shape
    pemb = params["player_emb_table"][player].reshape(B_ * S_, PLAYER_DIM)
    twop = params["player_emb_table"][two_player]                  # (B, 2, PD)
    temb = params["type_emb_table"][shot_type].reshape(B_ * S_, TYPE_DIM)

    a_xy = jnp.stack([a_x, a_y], axis=-1).astype(jnp.float32).reshape(B_ * S_, 2)
    b_xy = jnp.stack([b_x, b_y], axis=-1).astype(jnp.float32).reshape(B_ * S_, 2)
    xy = jnp.concatenate([a_xy, b_xy], axis=0)                     # (2BS, 2)

    two_a = jnp.repeat(twop[:, 0, :], S_, axis=0)
    two_b = jnp.repeat(twop[:, 1, :], S_, axis=0)
    twop_rep = jnp.concatenate([two_a, two_b], axis=0)             # (2BS, PD)

    pos_rep = jnp.tile(params["pos_table"][ENCODE_LEN:ENCODE_LEN + S_], (B_, 1))
    enc = encoder_output.astype(jnp.float32).reshape(B_ * S_ENC, D_MODEL)

    # additive (pad & causal) self-attn mask, pre-tiled over heads (head-major batch)
    keep = (shot_type != 0)[:, None, :] & jnp.tril(jnp.ones((S_, S_), bool))[None]
    mask_add = jnp.where(keep, 0.0, -1e9).astype(jnp.float32)      # (B, S, S)
    mask_add = jnp.tile(mask_add, (N_HEADS, 1, 1)).reshape(N_HEADS * B_ * S_, S_)

    bias_names = ["b_sct", "b_lp", "b_ct", "b_tp", "b_mil",
                  "s_g", "s_b", "c_g", "c_b", "f_b1", "f_b2", "f_g", "f_b"]
    bias = jnp.concatenate(
        [jnp.pad(params[k], ((0, 0), (0, 64 - params[k].shape[1]))) for k in bias_names],
        axis=0)                                                    # (13, 64)

    act = jnp.zeros((ACT_ROWS, ACT_COLS), jnp.float32)
    act = act.at[0:16, 0:32].set(temb)
    act = act.at[16:32, 0:32].set(pos_rep)
    act = act.at[32:48, 0:32].set(enc)
    act = act.at[0:32, 32:34].set(xy)
    act = act.at[32:64, 32:40].set(mask_add)
    act = act.at[0:32, 64:80].set(twop_rep)
    act = act.at[32:48, 64:80].set(pemb)
    act = act.at[48:61, 64:128].set(bias)
    return act


# ------------------------------- wrapper --------------------------------------
@jax.jit
def transformer_decoder_forward(player, a_x, a_y, b_x, b_y, shot_type,
                                encoder_output, two_player, params):
    B_, S_ = player.shape
    assert (B_, S_) == (B, S) and encoder_output.shape == (B, S_ENC, D_MODEL)

    act = _pack_activations(params, player, a_x, a_y, b_x, b_y, shot_type,
                            encoder_output, two_player)
    w32, w192 = _pack_weights(params)

    vmem = pl.BlockSpec(memory_space=pltpu.MemorySpace.VMEM)
    out_flat = pl.pallas_call(
        transformer_decoder_kernel,
        out_shape=jax.ShapeDtypeStruct((B_ * S_, D_MODEL), jnp.float32),
        in_specs=[vmem, vmem, vmem],
        out_specs=vmem,
        # ~68 KB bf16 weights + 32 KB act slab + 2 KB output; ~1.1 MFLOP total.
        cost_estimate=pl.CostEstimate(
            flops=1_100_000, transcendentals=650, bytes_accessed=103_000),
    )(act, w32, w192)
    return out_flat.reshape(B_, S_, D_MODEL)


# -------------------------------- main ----------------------------------------
if __name__ == "__main__":
    key = jax.random.PRNGKey(0)
    k_par, k_in = jax.random.split(key)
    params = make_params(k_par)

    ki = jax.random.split(k_in, 8)
    player = jax.random.randint(ki[0], (B, S), 0, PLAYER_NUM, dtype=jnp.int32)
    two_player = jax.random.randint(ki[1], (B, 2), 0, PLAYER_NUM, dtype=jnp.int32)
    shot_type = jax.random.randint(ki[2], (B, S), 0, TYPE_NUM, dtype=jnp.int32)
    player_A_x = jax.random.normal(ki[3], (B, S), jnp.float32)
    player_A_y = jax.random.normal(ki[4], (B, S), jnp.float32)
    player_B_x = jax.random.normal(ki[5], (B, S), jnp.float32)
    player_B_y = jax.random.normal(ki[6], (B, S), jnp.float32)
    encoder_output = jax.random.normal(ki[7], (B, S_ENC, D_MODEL), jnp.float32)

    out = transformer_decoder_forward(player, player_A_x, player_A_y,
                                      player_B_x, player_B_y, shot_type,
                                      encoder_output, two_player, params)
    jax.block_until_ready(out)
    assert out.shape == (B, S, D_MODEL)
    print("KERNEL_OK")
</pallas_src>

<mosaic_0001>
module attributes {stable_mosaic.version = 11 : i64} {
  func.func @transformer_decoder_kernel(%arg0: memref<64x128xf32, #tpu.memory_space<vmem>>, %arg1: memref<480x32xbf16, #tpu.memory_space<vmem>>, %arg2: memref<96x192xbf16, #tpu.memory_space<vmem>>, %arg3: memref<16x32xf32, #tpu.memory_space<vmem>>) attributes {dimension_semantics = [], scalar_prefetch = 0 : i64, scratch_operands = 0 : i64, tpu.core_type = #tpu.core_type<tc>} {
    %c0 = arith.constant 0 : index
    %c0_0 = arith.constant 0 : index
    %0 = vector.load %arg0[%c0, %c0_0] : memref<64x128xf32, #tpu.memory_space<vmem>>, vector<64x128xf32>
    %1 = vector.extract_strided_slice %0 {offsets = [0, 0], sizes = [16, 32], strides = [1, 1]} : vector<64x128xf32> to vector<16x32xf32>
    %2 = vector.extract_strided_slice %0 {offsets = [16, 0], sizes = [16, 32], strides = [1, 1]} : vector<64x128xf32> to vector<16x32xf32>
    %3 = vector.extract_strided_slice %0 {offsets = [32, 0], sizes = [16, 32], strides = [1, 1]} : vector<64x128xf32> to vector<16x32xf32>
    %4 = vector.extract_strided_slice %0 {offsets = [0, 32], sizes = [32, 32], strides = [1, 1]} : vector<64x128xf32> to vector<32x32xf32>
    %5 = vector.extract_strided_slice %0 {offsets = [32, 32], sizes = [32, 8], strides = [1, 1]} : vector<64x128xf32> to vector<32x8xf32>
    %6 = vector.extract_strided_slice %0 {offsets = [0, 64], sizes = [32, 32], strides = [1, 1]} : vector<64x128xf32> to vector<32x32xf32>
    %7 = vector.extract_strided_slice %0 {offsets = [32, 64], sizes = [16, 32], strides = [1, 1]} : vector<64x128xf32> to vector<16x32xf32>
    %8 = vector.extract_strided_slice %0 {offsets = [48, 64], sizes = [13, 64], strides = [1, 1]} : vector<64x128xf32> to vector<13x64xf32>
    %c32 = arith.constant 32 : index
    %c64 = arith.constant 64 : index
    %9 = vector.load %arg2[%c32, %c64] : memref<96x192xbf16, #tpu.memory_space<vmem>>, vector<32x128xbf16>
    %10 = arith.truncf %3 : vector<16x32xf32> to vector<16x32xbf16>
    %cst = arith.constant dense<0.000000e+00> : vector<16x128xf32>
    %11 = tpu.matmul %10, %9, %cst {dimension_numbers = #tpu.dot_dimension_numbers<[1], [0], [0], [1], [0, 0, 1, 1], [], []>} : vector<16x32xbf16>, vector<32x128xbf16>, vector<16x128xf32> -> vector<16x128xf32>
    %c0_1 = arith.constant 0 : index
    %c0_2 = arith.constant 0 : index
    %12 = vector.load %arg1[%c0_1, %c0_2] : memref<480x32xbf16, #tpu.memory_space<vmem>>, vector<32x32xbf16>
    %13 = arith.truncf %4 : vector<32x32xf32> to vector<32x32xbf16>
    %cst_3 = arith.constant dense<0.000000e+00> : vector<32x32xf32>
    %14 = tpu.matmul %13, %12, %cst_3 {dimension_numbers = #tpu.dot_dimension_numbers<[1], [0], [0], [1], [0, 0, 1, 1], [], []>} : vector<32x32xbf16>, vector<32x32xbf16>, vector<32x32xf32> -> vector<32x32xf32>
    %15 = vector.extract_strided_slice %8 {offsets = [0, 0], sizes = [1, 32], strides = [1, 1]} : vector<13x64xf32> to vector<1x32xf32>
    %16 = vector.broadcast %15 : vector<1x32xf32> to vector<32x32xf32>
    %17 = arith.addf %14, %16 : vector<32x32xf32>
    %cst_4 = arith.constant 0.000000e+00 : f32
    %18 = vector.broadcast %cst_4 : f32 to vector<32x32xf32>
    %19 = arith.maximumf %17, %18 : vector<32x32xf32>
    %c32_5 = arith.constant 32 : index
    %c0_6 = arith.constant 0 : index
    %20 = vector.load %arg1[%c32_5, %c0_6] : memref<480x32xbf16, #tpu.memory_space<vmem>>, vector<32x32xbf16>
    %21 = arith.truncf %19 : vector<32x32xf32> to vector<32x32xbf16>
    %cst_7 = arith.constant dense<0.000000e+00> : vector<32x32xf32>
    %22 = tpu.matmul %21, %20, %cst_7 {dimension_numbers = #tpu.dot_dimension_numbers<[1], [0], [0], [1], [0, 0, 1, 1], [], []>} : vector<32x32xbf16>, vector<32x32xbf16>, vector<32x32xf32> -> vector<32x32xf32>
    %c64_8 = arith.constant 64 : index
    %c0_9 = arith.constant 0 : index
    %23 = vector.load %arg1[%c64_8, %c0_9] : memref<480x32xbf16, #tpu.memory_space<vmem>>, vector<32x32xbf16>
    %24 = arith.truncf %6 : vector<32x32xf32> to vector<32x32xbf16>
    %cst_10 = arith.constant dense<0.000000e+00> : vector<32x32xf32>
    %25 = tpu.matmul %24, %23, %cst_10 {dimension_numbers = #tpu.dot_dimension_numbers<[1], [0], [0], [1], [0, 0, 1, 1], [], []>} : vector<32x32xbf16>, vector<32x32xbf16>, vector<32x32xf32> -> vector<32x32xf32>
    %26 = arith.addf %22, %25 : vector<32x32xf32>
    %27 = vector.extract_strided_slice %8 {offsets = [1, 0], sizes = [1, 32], strides = [1, 1]} : vector<13x64xf32> to vector<1x32xf32>
    %28 = vector.broadcast %27 : vector<1x32xf32> to vector<32x32xf32>
    %29 = arith.addf %26, %28 : vector<32x32xf32>
    %30 = vector.extract_strided_slice %29 {offsets = [0, 0], sizes = [16, 32], strides = [1, 1]} : vector<32x32xf32> to vector<16x32xf32>
    %c96 = arith.constant 96 : index
    %c0_11 = arith.constant 0 : index
    %31 = vector.load %arg1[%c96, %c0_11] : memref<480x32xbf16, #tpu.memory_space<vmem>>, vector<32x32xbf16>
    %32 = arith.truncf %30 : vector<16x32xf32> to vector<16x32xbf16>
    %cst_12 = arith.constant dense<0.000000e+00> : vector<16x32xf32>
    %33 = tpu.matmul %32, %31, %cst_12 {dimension_numbers = #tpu.dot_dimension_numbers<[1], [0], [0], [1], [0, 0, 1, 1], [], []>} : vector<16x32xbf16>, vector<32x32xbf16>, vector<16x32xf32> -> vector<16x32xf32>
    %34 = vector.extract_strided_slice %29 {offsets = [16, 0], sizes = [16, 32], strides = [1, 1]} : vector<32x32xf32> to vector<16x32xf32>
    %c128 = arith.constant 128 : index
    %c0_13 = arith.constant 0 : index
    %35 = vector.load %arg1[%c128, %c0_13] : memref<480x32xbf16, #tpu.memory_space<vmem>>, vector<32x32xbf16>
    %36 = arith.truncf %34 : vector<16x32xf32> to vector<16x32xbf16>
    %cst_14 = arith.constant dense<0.000000e+00> : vector<16x32xf32>
    %37 = tpu.matmul %36, %35, %cst_14 {dimension_numbers = #tpu.dot_dimension_numbers<[1], [0], [0], [1], [0, 0, 1, 1], [], []>} : vector<16x32xbf16>, vector<32x32xbf16>, vector<16x32xf32> -> vector<16x32xf32>
    %38 = arith.addf %33, %37 : vector<16x32xf32>
    %39 = vector.extract_strided_slice %8 {offsets = [2, 0], sizes = [1, 32], strides = [1, 1]} : vector<13x64xf32> to vector<1x32xf32>
    %40 = vector.broadcast %39 : vector<1x32xf32> to vector<16x32xf32>
    %41 = arith.addf %38, %40 : vector<16x32xf32>
    %42 = arith.addf %41, %2 : vector<16x32xf32>
    %c160 = arith.constant 160 : index
    %c0_15 = arith.constant 0 : index
    %43 = vector.load %arg1[%c160, %c0_15] : memref<480x32xbf16, #tpu.memory_space<vmem>>, vector<32x32xbf16>
    %44 = arith.truncf %1 : vector<16x32xf32> to vector<16x32xbf16>
    %cst_16 = arith.constant dense<0.000000e+00> : vector<16x32xf32>
    %45 = tpu.matmul %44, %43, %cst_16 {dimension_numbers = #tpu.dot_dimension_numbers<[1], [0], [0], [1], [0, 0, 1, 1], [], []>} : vector<16x32xbf16>, vector<32x32xbf16>, vector<16x32xf32> -> vector<16x32xf32>
    %c192 = arith.constant 192 : index
    %c0_17 = arith.constant 0 : index
    %46 = vector.load %arg1[%c192, %c0_17] : memref<480x32xbf16, #tpu.memory_space<vmem>>, vector<32x32xbf16>
    %47 = arith.truncf %7 : vector<16x32xf32> to vector<16x32xbf16>
    %cst_18 = arith.constant dense<0.000000e+00> : vector<16x32xf32>
    %48 = tpu.matmul %47, %46, %cst_18 {dimension_numbers = #tpu.dot_dimension_numbers<[1], [0], [0], [1], [0, 0, 1, 1], [], []>} : vector<16x32xbf16>, vector<32x32xbf16>, vector<16x32xf32> -> vector<16x32xf32>
    %49 = arith.addf %45, %48 : vector<16x32xf32>
    %50 = vector.extract_strided_slice %8 {offsets = [3, 0], sizes = [1, 32], strides = [1, 1]} : vector<13x64xf32> to vector<1x32xf32>
    %51 = vector.broadcast %50 : vector<1x32xf32> to vector<16x32xf32>
    %52 = arith.addf %49, %51 : vector<16x32xf32>
    %53 = arith.addf %52, %2 : vector<16x32xf32>
    %c224 = arith.constant 224 : index
    %c0_19 = arith.constant 0 : index
    %54 = vector.load %arg1[%c224, %c0_19] : memref<480x32xbf16, #tpu.memory_space<vmem>>, vector<32x32xbf16>
    %55 = arith.truncf %42 : vector<16x32xf32> to vector<16x32xbf16>
    %cst_20 = arith.constant dense<0.000000e+00> : vector<16x32xf32>
    %56 = tpu.matmul %55, %54, %cst_20 {dimension_numbers = #tpu.dot_dimension_numbers<[1], [0], [0], [1], [0, 0, 1, 1], [], []>} : vector<16x32xbf16>, vector<32x32xbf16>, vector<16x32xf32> -> vector<16x32xf32>
    %c256 = arith.constant 256 : index
    %c0_21 = arith.constant 0 : index
    %57 = vector.load %arg1[%c256, %c0_21] : memref<480x32xbf16, #tpu.memory_space<vmem>>, vector<32x32xbf16>
    %58 = arith.truncf %53 : vector<16x32xf32> to vector<16x32xbf16>
    %cst_22 = arith.constant dense<0.000000e+00> : vector<16x32xf32>
    %59 = tpu.matmul %58, %57, %cst_22 {dimension_numbers = #tpu.dot_dimension_numbers<[1], [0], [0], [1], [0, 0, 1, 1], [], []>} : vector<16x32xbf16>, vector<32x32xbf16>, vector<16x32xf32> -> vector<16x32xf32>
    %60 = arith.addf %56, %59 : vector<16x32xf32>
    %61 = vector.extract_strided_slice %8 {offsets = [4, 0], sizes = [1, 32], strides = [1, 1]} : vector<13x64xf32> to vector<1x32xf32>
    %62 = vector.broadcast %61 : vector<1x32xf32> to vector<16x32xf32>
    %63 = arith.addf %60, %62 : vector<16x32xf32>
    %c0_23 = arith.constant 0 : index
    %c0_24 = arith.constant 0 : index
    %64 = vector.load %arg2[%c0_23, %c0_24] : memref<96x192xbf16, #tpu.memory_space<vmem>>, vector<32x192xbf16>
    %65 = arith.truncf %63 : vector<16x32xf32> to vector<16x32xbf16>
    %cst_25 = arith.constant dense<0.000000e+00> : vector<16x192xf32>
    %66 = tpu.matmul %65, %64, %cst_25 {dimension_numbers = #tpu.dot_dimension_numbers<[1], [0], [0], [1], [0, 0, 1, 1], [], []>} : vector<16x32xbf16>, vector<32x192xbf16>, vector<16x192xf32> -> vector<16x192xf32>
    %67 = vector.shape_cast %5 : vector<32x8xf32> to vector<4x8x8xf32>
    %68 = vector.extract_strided_slice %66 {offsets = [0, 0], sizes = [16, 32], strides = [1, 1]} : vector<16x192xf32> to vector<16x32xf32>
    %69 = vector.shape_cast %68 : vector<16x32xf32> to vector<2x8x32xf32>
    %70 = vector.extract_strided_slice %66 {offsets = [0, 32], sizes = [16, 32], strides = [1, 1]} : vector<16x192xf32> to vector<16x32xf32>
    %71 = vector.shape_cast %70 : vector<16x32xf32> to vector<2x8x32xf32>
    %72 = tpu.concatenate %69, %71 in 0 : vector<2x8x32xf32>, vector<2x8x32xf32> -> vector<4x8x32xf32>
    %73 = vector.extract_strided_slice %66 {offsets = [0, 64], sizes = [16, 32], strides = [1, 1]} : vector<16x192xf32> to vector<16x32xf32>
    %74 = vector.shape_cast %73 : vector<16x32xf32> to vector<2x8x32xf32>
    %75 = vector.extract_strided_slice %66 {offsets = [0, 96], sizes = [16, 32], strides = [1, 1]} : vector<16x192xf32> to vector<16x32xf32>
    %76 = vector.shape_cast %75 : vector<16x32xf32> to vector<2x8x32xf32>
    %77 = tpu.concatenate %74, %76 in 0 : vector<2x8x32xf32>, vector<2x8x32xf32> -> vector<4x8x32xf32>
    %78 = vector.extract_strided_slice %66 {offsets = [0, 128], sizes = [16, 32], strides = [1, 1]} : vector<16x192xf32> to vector<16x32xf32>
    %79 = vector.shape_cast %78 : vector<16x32xf32> to vector<2x8x32xf32>
    %80 = vector.extract_strided_slice %66 {offsets = [0, 160], sizes = [16, 32], strides = [1, 1]} : vector<16x192xf32> to vector<16x32xf32>
    %81 = vector.shape_cast %80 : vector<16x32xf32> to vector<2x8x32xf32>
    %82 = tpu.concatenate %79, %81 in 0 : vector<2x8x32xf32>, vector<2x8x32xf32> -> vector<4x8x32xf32>
    %83 = vector.extract_strided_slice %8 {offsets = [5, 0], sizes = [1, 32], strides = [1, 1]} : vector<13x64xf32> to vector<1x32xf32>
    %84 = vector.extract_strided_slice %8 {offsets = [6, 0], sizes = [1, 32], strides = [1, 1]} : vector<13x64xf32> to vector<1x32xf32>
    %85 = arith.truncf %72 : vector<4x8x32xf32> to vector<4x8x32xbf16>
    %86 = arith.truncf %77 : vector<4x8x32xf32> to vector<4x8x32xbf16>
    "tpu.trace_start"() <{level = 10 : i32, message = "bqd,bkd->bqk"}> : () -> ()
    %cst_26 = arith.constant dense<0.000000e+00> : vector<4x8x8xf32>
    %87 = tpu.matmul %85, %86, %cst_26 {dimension_numbers = #tpu.dot_dimension_numbers<[2], [2], [1], [1], [0, 0, 0, 1, 1, 1], [0], [0]>} : vector<4x8x32xbf16>, vector<4x8x32xbf16>, vector<4x8x8xf32> -> vector<4x8x8xf32>
    "tpu.trace_stop"() : () -> ()
    %cst_27 = arith.constant 0.176776692 : f32
    %88 = vector.broadcast %cst_27 : f32 to vector<4x8x8xf32>
    %89 = arith.mulf %87, %88 : vector<4x8x8xf32>
    %90 = arith.addf %89, %67 : vector<4x8x8xf32>
    %cst_28 = arith.constant dense<0xFF800000> : vector<4x8xf32>
    %91 = vector.multi_reduction <maximumf>, %90, %cst_28 [2] : vector<4x8x8xf32> to vector<4x8xf32>
    %92 = vector.shape_cast %91 : vector<4x8xf32> to vector<4x8x1xf32>
    %93 = vector.broadcast %92 : vector<4x8x1xf32> to vector<4x8x8xf32>
    %94 = arith.subf %90, %93 : vector<4x8x8xf32>
    %95 = math.exp %94 : vector<4x8x8xf32>
    %cst_29 = arith.constant dense<0.000000e+00> : vector<4x8xf32>
    %96 = vector.multi_reduction <add>, %95, %cst_29 [2] : vector<4x8x8xf32> to vector<4x8xf32>
    %97 = vector.shape_cast %96 : vector<4x8xf32> to vector<4x8x1xf32>
    %98 = tpu.reciprocal %97 {approx = true} : vector<4x8x1xf32> -> vector<4x8x1xf32>
    %99 = vector.broadcast %98 : vector<4x8x1xf32> to vector<4x8x8xf32>
    %100 = arith.mulf %95, %99 : vector<4x8x8xf32>
    %101 = arith.truncf %100 : vector<4x8x8xf32> to vector<4x8x8xbf16>
    %102 = arith.truncf %82 : vector<4x8x32xf32> to vector<4x8x32xbf16>
    "tpu.trace_start"() <{level = 10 : i32, message = "bqk,bkd->bqd"}> : () -> ()
    %cst_30 = arith.constant dense<0.000000e+00> : vector<4x8x32xf32>
    %103 = tpu.matmul %101, %102, %cst_30 {dimension_numbers = #tpu.dot_dimension_numbers<[2], [1], [1], [2], [0, 0, 0, 1, 1, 2], [0], [0]>} : vector<4x8x8xbf16>, vector<4x8x32xbf16>, vector<4x8x32xf32> -> vector<4x8x32xf32>
    "tpu.trace_stop"() : () -> ()
    %104 = vector.extract_strided_slice %103 {offsets = [0, 0, 0], sizes = [2, 8, 32], strides = [1, 1, 1]} : vector<4x8x32xf32> to vector<2x8x32xf32>
    %105 = vector.shape_cast %104 : vector<2x8x32xf32> to vector<16x32xf32>
    %106 = vector.extract_strided_slice %103 {offsets = [2, 0, 0], sizes = [2, 8, 32], strides = [1, 1, 1]} : vector<4x8x32xf32> to vector<2x8x32xf32>
    %107 = vector.shape_cast %106 : vector<2x8x32xf32> to vector<16x32xf32>
    %108 = tpu.concatenate %105, %107 in 1 : vector<16x32xf32>, vector<16x32xf32> -> vector<16x64xf32>
    %c288 = arith.constant 288 : index
    %c0_31 = arith.constant 0 : index
    %109 = vector.load %arg1[%c288, %c0_31] : memref<480x32xbf16, #tpu.memory_space<vmem>>, vector<64x32xbf16>
    %110 = arith.truncf %108 : vector<16x64xf32> to vector<16x64xbf16>
    %cst_32 = arith.constant dense<0.000000e+00> : vector<16x32xf32>
    %111 = tpu.matmul %110, %109, %cst_32 {dimension_numbers = #tpu.dot_dimension_numbers<[1], [0], [0], [1], [0, 0, 1, 1], [], []>} : vector<16x64xbf16>, vector<64x32xbf16>, vector<16x32xf32> -> vector<16x32xf32>
    %112 = arith.addf %63, %111 : vector<16x32xf32>
    %cst_33 = arith.constant dense<0.000000e+00> : vector<16xf32>
    %113 = vector.multi_reduction <add>, %112, %cst_33 [1] : vector<16x32xf32> to vector<16xf32>
    %114 = vector.shape_cast %113 : vector<16xf32> to vector<16x1xf32>
    %cst_34 = arith.constant 3.200000e+01 : f32
    %115 = vector.broadcast %cst_34 : f32 to vector<16x1xf32>
    %116 = arith.divf %114, %115 : vector<16x1xf32>
    %117 = vector.broadcast %116 : vector<16x1xf32> to vector<16x32xf32>
    %118 = arith.subf %112, %117 : vector<16x32xf32>
    %119 = arith.mulf %118, %118 : vector<16x32xf32>
    %cst_35 = arith.constant dense<0.000000e+00> : vector<16xf32>
    %120 = vector.multi_reduction <add>, %119, %cst_35 [1] : vector<16x32xf32> to vector<16xf32>
    %121 = vector.shape_cast %120 : vector<16xf32> to vector<16x1xf32>
    %cst_36 = arith.constant 3.200000e+01 : f32
    %122 = vector.broadcast %cst_36 : f32 to vector<16x1xf32>
    %123 = arith.divf %121, %122 : vector<16x1xf32>
    %124 = vector.broadcast %116 : vector<16x1xf32> to vector<16x32xf32>
    %125 = arith.subf %112, %124 : vector<16x32xf32>
    %cst_37 = arith.constant 9.99999997E-7 : f32
    %126 = vector.broadcast %cst_37 : f32 to vector<16x1xf32>
    %127 = arith.addf %123, %126 : vector<16x1xf32>
    %128 = math.rsqrt %127 : vector<16x1xf32>
    %129 = vector.broadcast %128 : vector<16x1xf32> to vector<16x32xf32>
    %130 = arith.mulf %125, %129 : vector<16x32xf32>
    %131 = vector.broadcast %83 : vector<1x32xf32> to vector<16x32xf32>
    %132 = arith.mulf %130, %131 : vector<16x32xf32>
    %133 = vector.broadcast %84 : vector<1x32xf32> to vector<16x32xf32>
    %134 = arith.addf %132, %133 : vector<16x32xf32>
    %c32_38 = arith.constant 32 : index
    %c0_39 = arith.constant 0 : index
    %135 = vector.load %arg2[%c32_38, %c0_39] : memref<96x192xbf16, #tpu.memory_space<vmem>>, vector<32x64xbf16>
    %136 = arith.truncf %134 : vector<16x32xf32> to vector<16x32xbf16>
    %cst_40 = arith.constant dense<0.000000e+00> : vector<16x64xf32>
    %137 = tpu.matmul %136, %135, %cst_40 {dimension_numbers = #tpu.dot_dimension_numbers<[1], [0], [0], [1], [0, 0, 1, 1], [], []>} : vector<16x32xbf16>, vector<32x64xbf16>, vector<16x64xf32> -> vector<16x64xf32>
    %138 = vector.extract_strided_slice %137 {offsets = [0, 0], sizes = [16, 32], strides = [1, 1]} : vector<16x64xf32> to vector<16x32xf32>
    %139 = vector.shape_cast %138 : vector<16x32xf32> to vector<2x8x32xf32>
    %140 = vector.extract_strided_slice %137 {offsets = [0, 32], sizes = [16, 32], strides = [1, 1]} : vector<16x64xf32> to vector<16x32xf32>
    %141 = vector.shape_cast %140 : vector<16x32xf32> to vector<2x8x32xf32>
    %142 = tpu.concatenate %139, %141 in 0 : vector<2x8x32xf32>, vector<2x8x32xf32> -> vector<4x8x32xf32>
    %143 = vector.extract_strided_slice %11 {offsets = [0, 0], sizes = [16, 32], strides = [1, 1]} : vector<16x128xf32> to vector<16x32xf32>
    %144 = vector.shape_cast %143 : vector<16x32xf32> to vector<2x8x32xf32>
    %145 = vector.extract_strided_slice %11 {offsets = [0, 32], sizes = [16, 32], strides = [1, 1]} : vector<16x128xf32> to vector<16x32xf32>
    %146 = vector.shape_cast %145 : vector<16x32xf32> to vector<2x8x32xf32>
    %147 = tpu.concatenate %144, %146 in 0 : vector<2x8x32xf32>, vector<2x8x32xf32> -> vector<4x8x32xf32>
    %148 = vector.extract_strided_slice %11 {offsets = [0, 64], sizes = [16, 32], strides = [1, 1]} : vector<16x128xf32> to vector<16x32xf32>
    %149 = vector.shape_cast %148 : vector<16x32xf32> to vector<2x8x32xf32>
    %150 = vector.extract_strided_slice %11 {offsets = [0, 96], sizes = [16, 32], strides = [1, 1]} : vector<16x128xf32> to vector<16x32xf32>
    %151 = vector.shape_cast %150 : vector<16x32xf32> to vector<2x8x32xf32>
    %152 = tpu.concatenate %149, %151 in 0 : vector<2x8x32xf32>, vector<2x8x32xf32> -> vector<4x8x32xf32>
    %153 = vector.extract_strided_slice %8 {offsets = [7, 0], sizes = [1, 32], strides = [1, 1]} : vector<13x64xf32> to vector<1x32xf32>
    %154 = vector.extract_strided_slice %8 {offsets = [8, 0], sizes = [1, 32], strides = [1, 1]} : vector<13x64xf32> to vector<1x32xf32>
    %155 = arith.truncf %142 : vector<4x8x32xf32> to vector<4x8x32xbf16>
    %156 = arith.truncf %147 : vector<4x8x32xf32> to vector<4x8x32xbf16>
    "tpu.trace_start"() <{level = 10 : i32, message = "bqd,bkd->bqk"}> : () -> ()
    %cst_41 = arith.constant dense<0.000000e+00> : vector<4x8x8xf32>
    %157 = tpu.matmul %155, %156, %cst_41 {dimension_numbers = #tpu.dot_dimension_numbers<[2], [2], [1], [1], [0, 0, 0, 1, 1, 1], [0], [0]>} : vector<4x8x32xbf16>, vector<4x8x32xbf16>, vector<4x8x8xf32> -> vector<4x8x8xf32>
    "tpu.trace_stop"() : () -> ()
    %cst_42 = arith.constant 0.176776692 : f32
    %158 = vector.broadcast %cst_42 : f32 to vector<4x8x8xf32>
    %159 = arith.mulf %157, %158 : vector<4x8x8xf32>
    %cst_43 = arith.constant dense<0xFF800000> : vector<4x8xf32>
    %160 = vector.multi_reduction <maximumf>, %159, %cst_43 [2] : vector<4x8x8xf32> to vector<4x8xf32>
    %161 = vector.shape_cast %160 : vector<4x8xf32> to vector<4x8x1xf32>
    %162 = vector.broadcast %161 : vector<4x8x1xf32> to vector<4x8x8xf32>
    %163 = arith.subf %159, %162 : vector<4x8x8xf32>
    %164 = math.exp %163 : vector<4x8x8xf32>
    %cst_44 = arith.constant dense<0.000000e+00> : vector<4x8xf32>
    %165 = vector.multi_reduction <add>, %164, %cst_44 [2] : vector<4x8x8xf32> to vector<4x8xf32>
    %166 = vector.shape_cast %165 : vector<4x8xf32> to vector<4x8x1xf32>
    %167 = tpu.reciprocal %166 {approx = true} : vector<4x8x1xf32> -> vector<4x8x1xf32>
    %168 = vector.broadcast %167 : vector<4x8x1xf32> to vector<4x8x8xf32>
    %169 = arith.mulf %164, %168 : vector<4x8x8xf32>
    %170 = arith.truncf %169 : vector<4x8x8xf32> to vector<4x8x8xbf16>
    %171 = arith.truncf %152 : vector<4x8x32xf32> to vector<4x8x32xbf16>
    "tpu.trace_start"() <{level = 10 : i32, message = "bqk,bkd->bqd"}> : () -> ()
    %cst_45 = arith.constant dense<0.000000e+00> : vector<4x8x32xf32>
    %172 = tpu.matmul %170, %171, %cst_45 {dimension_numbers = #tpu.dot_dimension_numbers<[2], [1], [1], [2], [0, 0, 0, 1, 1, 2], [0], [0]>} : vector<4x8x8xbf16>, vector<4x8x32xbf16>, vector<4x8x32xf32> -> vector<4x8x32xf32>
    "tpu.trace_stop"() : () -> ()
    %173 = vector.extract_strided_slice %172 {offsets = [0, 0, 0], sizes = [2, 8, 32], strides = [1, 1, 1]} : vector<4x8x32xf32> to vector<2x8x32xf32>
    %174 = vector.shape_cast %173 : vector<2x8x32xf32> to vector<16x32xf32>
    %175 = vector.extract_strided_slice %172 {offsets = [2, 0, 0], sizes = [2, 8, 32], strides = [1, 1, 1]} : vector<4x8x32xf32> to vector<2x8x32xf32>
    %176 = vector.shape_cast %175 : vector<2x8x32xf32> to vector<16x32xf32>
    %177 = tpu.concatenate %174, %176 in 1 : vector<16x32xf32>, vector<16x32xf32> -> vector<16x64xf32>
    %c352 = arith.constant 352 : index
    %c0_46 = arith.constant 0 : index
    %178 = vector.load %arg1[%c352, %c0_46] : memref<480x32xbf16, #tpu.memory_space<vmem>>, vector<64x32xbf16>
    %179 = arith.truncf %177 : vector<16x64xf32> to vector<16x64xbf16>
    %cst_47 = arith.constant dense<0.000000e+00> : vector<16x32xf32>
    %180 = tpu.matmul %179, %178, %cst_47 {dimension_numbers = #tpu.dot_dimension_numbers<[1], [0], [0], [1], [0, 0, 1, 1], [], []>} : vector<16x64xbf16>, vector<64x32xbf16>, vector<16x32xf32> -> vector<16x32xf32>
    %181 = arith.addf %134, %180 : vector<16x32xf32>
    %cst_48 = arith.constant dense<0.000000e+00> : vector<16xf32>
    %182 = vector.multi_reduction <add>, %181, %cst_48 [1] : vector<16x32xf32> to vector<16xf32>
    %183 = vector.shape_cast %182 : vector<16xf32> to vector<16x1xf32>
    %cst_49 = arith.constant 3.200000e+01 : f32
    %184 = vector.broadcast %cst_49 : f32 to vector<16x1xf32>
    %185 = arith.divf %183, %184 : vector<16x1xf32>
    %186 = vector.broadcast %185 : vector<16x1xf32> to vector<16x32xf32>
    %187 = arith.subf %181, %186 : vector<16x32xf32>
    %188 = arith.mulf %187, %187 : vector<16x32xf32>
    %cst_50 = arith.constant dense<0.000000e+00> : vector<16xf32>
    %189 = vector.multi_reduction <add>, %188, %cst_50 [1] : vector<16x32xf32> to vector<16xf32>
    %190 = vector.shape_cast %189 : vector<16xf32> to vector<16x1xf32>
    %cst_51 = arith.constant 3.200000e+01 : f32
    %191 = vector.broadcast %cst_51 : f32 to vector<16x1xf32>
    %192 = arith.divf %190, %191 : vector<16x1xf32>
    %193 = vector.broadcast %185 : vector<16x1xf32> to vector<16x32xf32>
    %194 = arith.subf %181, %193 : vector<16x32xf32>
    %cst_52 = arith.constant 9.99999997E-7 : f32
    %195 = vector.broadcast %cst_52 : f32 to vector<16x1xf32>
    %196 = arith.addf %192, %195 : vector<16x1xf32>
    %197 = math.rsqrt %196 : vector<16x1xf32>
    %198 = vector.broadcast %197 : vector<16x1xf32> to vector<16x32xf32>
    %199 = arith.mulf %194, %198 : vector<16x32xf32>
    %200 = vector.broadcast %153 : vector<1x32xf32> to vector<16x32xf32>
    %201 = arith.mulf %199, %200 : vector<16x32xf32>
    %202 = vector.broadcast %154 : vector<1x32xf32> to vector<16x32xf32>
    %203 = arith.addf %201, %202 : vector<16x32xf32>
    %c64_53 = arith.constant 64 : index
    %c0_54 = arith.constant 0 : index
    %204 = vector.load %arg2[%c64_53, %c0_54] : memref<96x192xbf16, #tpu.memory_space<vmem>>, vector<32x64xbf16>
    %205 = arith.truncf %203 : vector<16x32xf32> to vector<16x32xbf16>
    %cst_55 = arith.constant dense<0.000000e+00> : vector<16x64xf32>
    %206 = tpu.matmul %205, %204, %cst_55 {dimension_numbers = #tpu.dot_dimension_numbers<[1], [0], [0], [1], [0, 0, 1, 1], [], []>} : vector<16x32xbf16>, vector<32x64xbf16>, vector<16x64xf32> -> vector<16x64xf32>
    %207 = vector.extract_strided_slice %8 {offsets = [9, 0], sizes = [1, 64], strides = [1, 1]} : vector<13x64xf32> to vector<1x64xf32>
    %208 = vector.broadcast %207 : vector<1x64xf32> to vector<16x64xf32>
    %209 = arith.addf %206, %208 : vector<16x64xf32>
    %cst_56 = arith.constant 0.000000e+00 : f32
    %210 = vector.broadcast %cst_56 : f32 to vector<16x64xf32>
    %211 = arith.maximumf %209, %210 : vector<16x64xf32>
    %c416 = arith.constant 416 : index
    %c0_57 = arith.constant 0 : index
    %212 = vector.load %arg1[%c416, %c0_57] : memref<480x32xbf16, #tpu.memory_space<vmem>>, vector<64x32xbf16>
    %213 = arith.truncf %211 : vector<16x64xf32> to vector<16x64xbf16>
    %cst_58 = arith.constant dense<0.000000e+00> : vector<16x32xf32>
    %214 = tpu.matmul %213, %212, %cst_58 {dimension_numbers = #tpu.dot_dimension_numbers<[1], [0], [0], [1], [0, 0, 1, 1], [], []>} : vector<16x64xbf16>, vector<64x32xbf16>, vector<16x32xf32> -> vector<16x32xf32>
    %215 = vector.extract_strided_slice %8 {offsets = [10, 0], sizes = [1, 32], strides = [1, 1]} : vector<13x64xf32> to vector<1x32xf32>
    %216 = vector.broadcast %215 : vector<1x32xf32> to vector<16x32xf32>
    %217 = arith.addf %214, %216 : vector<16x32xf32>
    %218 = arith.addf %217, %203 : vector<16x32xf32>
    %219 = vector.extract_strided_slice %8 {offsets = [11, 0], sizes = [1, 32], strides = [1, 1]} : vector<13x64xf32> to vector<1x32xf32>
    %220 = vector.extract_strided_slice %8 {offsets = [12, 0], sizes = [1, 32], strides = [1, 1]} : vector<13x64xf32> to vector<1x32xf32>
    %cst_59 = arith.constant dense<0.000000e+00> : vector<16xf32>
    %221 = vector.multi_reduction <add>, %218, %cst_59 [1] : vector<16x32xf32> to vector<16xf32>
    %222 = vector.shape_cast %221 : vector<16xf32> to vector<16x1xf32>
    %cst_60 = arith.constant 3.200000e+01 : f32
    %223 = vector.broadcast %cst_60 : f32 to vector<16x1xf32>
    %224 = arith.divf %222, %223 : vector<16x1xf32>
    %225 = vector.broadcast %224 : vector<16x1xf32> to vector<16x32xf32>
    %226 = arith.subf %218, %225 : vector<16x32xf32>
    %227 = arith.mulf %226, %226 : vector<16x32xf32>
    %cst_61 = arith.constant dense<0.000000e+00> : vector<16xf32>
    %228 = vector.multi_reduction <add>, %227, %cst_61 [1] : vector<16x32xf32> to vector<16xf32>
    %229 = vector.shape_cast %228 : vector<16xf32> to vector<16x1xf32>
    %cst_62 = arith.constant 3.200000e+01 : f32
    %230 = vector.broadcast %cst_62 : f32 to vector<16x1xf32>
    %231 = arith.divf %229, %230 : vector<16x1xf32>
    %232 = vector.broadcast %224 : vector<16x1xf32> to vector<16x32xf32>
    %233 = arith.subf %218, %232 : vector<16x32xf32>
    %cst_63 = arith.constant 9.99999997E-7 : f32
    %234 = vector.broadcast %cst_63 : f32 to vector<16x1xf32>
    %235 = arith.addf %231, %234 : vector<16x1xf32>
    %236 = math.rsqrt %235 : vector<16x1xf32>
    %237 = vector.broadcast %236 : vector<16x1xf32> to vector<16x32xf32>
    %238 = arith.mulf %233, %237 : vector<16x32xf32>
    %239 = vector.broadcast %219 : vector<1x32xf32> to vector<16x32xf32>
    %240 = arith.mulf %238, %239 : vector<16x32xf32>
    %241 = vector.broadcast %220 : vector<1x32xf32> to vector<16x32xf32>
    %242 = arith.addf %240, %241 : vector<16x32xf32>
    %c0_64 = arith.constant 0 : index
    %c0_65 = arith.constant 0 : index
    %243 = vector.load %arg3[%c0_64, %c0_65] : memref<16x32xf32, #tpu.memory_space<vmem>>, vector<16x32xf32>
    tpu.vector_store %arg3[%c0_64, %c0_65], %242 {strides = array<i32>} : memref<16x32xf32, #tpu.memory_space<vmem>>, vector<16x32xf32>,
    return
  }
}

</mosaic_0001>

<llo_original>
// kernel: transformer_decoder_forward.1
$region0: #{transformer_decoder_forward.1}
  #allocation0 [shape = 'u32[]', space=smem, size = 0x4, offset = 0x4, fixed_abs, tag = 'smem constant byte address 0x4 - core index']
  #allocation1 [shape = 'u32[144,128]{1,0:T(1,128)}', space=vmem, size = 0x12000, scoped, tag = 'internal scratch']
  %s0 = inlined_call_operand.vmem [shape: f32[64,128], index: 0, kind: input, shape index: {}]
  %s1 = inlined_call_operand.vmem [shape: bf16[480,32], index: 1, kind: input, shape index: {}]
  %s2 = inlined_call_operand.vmem [shape: bf16[96,192], index: 2, kind: input, shape index: {}]
  %s3 = inlined_call_operand.hbm [shape: f32[16,32], index: 3, kind: output, shape index: {}]
  %s4 = sld [smem:[#allocation0]]
  $region22: #{transformer_decoder_forward.1} parent=0
    _
  %s6 = ssub.s32 1, %s4
  %s7 = scalar_select 0, %s6, %s4
  $region1: #{transformer_decoder_forward.1} parent=0
    #allocation2 [shape = 'u8[8192]{0}', space=vmem, size = 0x2000, scoped, tag = 'output window, operand 0, single buffered']
    #allocation3 [shape = 's32[1]{0}', space=sflag, size = 0x4, scoped, tag = 'scoped memory for transformer_decoder_forward.1']
    %8 = vsyncpa [#allocation3], 0
    // Predicated region
    $region2: #{transformer_decoder_forward.1} parent=1 // pred_check
      _
    $region3: #{transformer_decoder_forward.1} parent=1 // pred_check_branch
      %10 = sbr.rel (0) target = $region5
    $region4: #{transformer_decoder_forward.1} parent=1 // pred_region
      _
    $region5: #{transformer_decoder_forward.1} parent=1 // pred_fallthru
      _
    // Predicated region
    $region6: #{transformer_decoder_forward.1} parent=1 // pred_check
      _
    $region7: #{transformer_decoder_forward.1} parent=1 // pred_check_branch
      %12 = sbr.rel (0) target = $region9
    $region8: #{transformer_decoder_forward.1} parent=1 // pred_region
      _
    $region9: #{transformer_decoder_forward.1} parent=1 // pred_fallthru
      _
    // Predicated region
    $region10: #{transformer_decoder_forward.1} parent=1 // pred_check
      _
    $region11: #{transformer_decoder_forward.1} parent=1 // pred_check_branch
      %14 = sbr.rel (0) target = $region13
    $region12: #{transformer_decoder_forward.1} parent=1 // pred_region
      _
    $region13: #{transformer_decoder_forward.1} parent=1 // pred_fallthru
      _
    %v16 = vld [vmem:[%s0] sm:$0xff]
    %v17 = vld [vmem:[%s0 + $0x8] sm:$0xff]
    %v18 = vld [vmem:[%s0 + $0x10] sm:$0xff]
    %v19 = vld [vmem:[%s0 + $0x18] sm:$0xff]
    %v20 = vld [vmem:[%s0 + $0x20] sm:$0xff]
    %v21 = vld [vmem:[%s0 + $0x28] sm:$0xff]
    %v22 = vld [vmem:[%s0 + $0x30] sm:$0xff]
    %v23 = vld [vmem:[%s0 + $0x38] sm:$0xff]
    %v24 = vld [vmem:[%s2 + $0x20] sm:$0xff]
    %v25 = vld [vmem:[%s2 + $0x28] sm:$0xff]
    %v26 = vld [vmem:[%s2 + $0x30] sm:$0xff]
    %v27 = vld [vmem:[%s2 + $0x38] sm:$0xff]
    %v28 = vpack.c.bf16 %v21, %v20
    %v33 = vunpack.c.l.b16 %v24
    %v34 = vunpack.c.h.b16 %v24
    %v35 = vunpack.c.l.b16 %v25
    %v36 = vunpack.c.h.b16 %v25
    %v37 = vunpack.c.l.b16 %v26
    %v38 = vunpack.c.h.b16 %v26
    %v39 = vunpack.c.l.b16 %v27
    %v40 = vunpack.c.h.b16 %v27
    %v41 = vpack.c.b16 %v35, %v33
    %v42 = vpack.c.b16 %v36, %v34
    %v43 = vpack.c.b16 %v39, %v37
    %v44 = vpack.c.b16 %v40, %v38
    %45 = vrot.lane.b32.xlu0 %v41, 64
    %v46 = vpop.permute.xlu0 %45
    %47 = vrot.lane.b32.xlu0 %v42, 64
    %v48 = vpop.permute.xlu0 %47
    %49 = vrot.lane.b32.xlu0 %v43, 64
    %v50 = vpop.permute.xlu0 %49
    %51 = vrot.lane.b32.xlu0 %v44, 64
    %v52 = vpop.permute.xlu0 %51
    %vm53 = vcmask 523264
    %v54 = vsel %vm53, %v46, %v48
    %v55 = vsel %vm53, %v50, %v52
    %vm58 = vcmask 261120
    %v60 = vsel %vm58, %v28, 0
    %62 = vmatprep.subr.bf16.mxu0 0
    %63 = vmatpush1.bf16.msra.mxu0 0
    %64 = vmatprep.subr.bf16.mxu0 0
    %65 = vmatpush1.bf16.msra.mxu0 0
    %66 = vmatprep.subr.bf16.mxu0 0
    %67 = vmatpush1.bf16.msra.mxu0 0
    %68 = vmatprep.subr.bf16.mxu0 0
    %69 = vmatpush1.bf16.msra.mxu0 0
    %70 = vmatprep.subr.bf16.mxu0 0
    %71 = vmatpush1.bf16.msra.mxu0 0
    %72 = vmatprep.subr.bf16.mxu0 0
    %73 = vmatpush1.bf16.msra.mxu0 0
    %74 = vmatprep.subr.bf16.mxu0 0
    %75 = vmatpush1.bf16.msra.mxu0 %v55
    %76 = vmatprep.subr.bf16.mxu0 0
    %77 = vmatpush1.bf16.msra.mxu0 %v54
    %78 = vmatprep.subr.bf16.mxu0 0
    %79 = vmatpush2.bf16.msra.mxu0 0
    %80 = vmatprep.subr.bf16.mxu0 0
    %81 = vmatpush2.bf16.msra.mxu0 0
    %82 = vmatprep.subr.bf16.mxu0 0
    %83 = vmatpush2.bf16.msra.mxu0 0
    %84 = vmatprep.subr.bf16.mxu0 0
    %85 = vmatpush2.bf16.msra.mxu0 0
    %86 = vmatprep.subr.bf16.mxu0 0
    %87 = vmatpush2.bf16.msra.mxu0 0
    %88 = vmatprep.subr.bf16.mxu0 0
    %89 = vmatpush2.bf16.msra.mxu0 0
    %90 = vmatprep.subr.bf16.mxu0 0
    %91 = vmatpush2.bf16.msra.mxu0 0
    %92 = vmatprep.subr.bf16.mxu0 0
    %93 = vmatpush2.bf16.msra.mxu0 0
    %94 = vmatprep.mubr.bf16.mxu0 0
    %95 = vmatmul.mubr.bf16.gmra.mxu0 %v60
    %v96 = vpop.f32.mrf.mxu0
    %v97 = vadd.f32 0.0, %v96
    %v98 = vpop.f32.mrf.mxu0
    %v99 = vpop.f32.mrf.mxu0
    %v100 = vadd.f32 0.0, %v99
    %v101 = vpop.f32.mrf.mxu0
    %102 = vdwg.mxu0
    %v103 = vld [vmem:[%s1] sm:$0xf]
    %v104 = vld [vmem:[%s1 + $0x4] sm:$0xf]
    %v105 = vld [vmem:[%s1 + $0x8] sm:$0xf]
    %v106 = vld [vmem:[%s1 + $0xc] sm:$0xf]
    %v107 = vpack.c.bf16 %v17, %v16
    %v108 = vpack.c.bf16 %v19, %v18
    %v109 = vlaneseq
    %v110 = vshrl.u32 %v109, 7
    %v111 = vsub.s32 0, %v110
    %v112 = vrot.slane %v22, %v111
    %115 = vrot.lane.b32.xlu0 %v107, 96
    %v116 = vpop.permute.xlu0 %115
    %117 = vrot.lane.b32.xlu0 %v108, 96
    %v118 = vpop.permute.xlu0 %117
    %v123 = vunpack.c.l.b16 %v103
    %v124 = vunpack.c.l.b16 %v104
    %v125 = vunpack.c.l.b16 %v105
    %v126 = vunpack.c.l.b16 %v106
    %v127 = vpack.c.b16 %v124, %v123
    %v128 = vpack.c.b16 %v126, %v125
    %132 = vrot.lane.b32.xlu0 %v112, 64
    %v133 = vpop.permute.xlu0 %132
    %v136 = vsel %vm58, %v116, 0
    %v139 = vsel %vm58, %v118, 0
    %141 = vmatprep.subr.bf16.mxu0 0
    %142 = vmatpush1.bf16.msra.mxu0 0
    %143 = vmatprep.subr.bf16.mxu0 0
    %144 = vmatpush1.bf16.msra.mxu0 0
    %145 = vmatprep.subr.bf16.mxu0 0
    %146 = vmatpush1.bf16.msra.mxu0 0
    %147 = vmatprep.subr.bf16.mxu0 0
    %148 = vmatpush1.bf16.msra.mxu0 0
    %149 = vmatprep.subr.bf16.mxu0 0
    %150 = vmatpush1.bf16.msra.mxu0 0
    %151 = vmatprep.subr.bf16.mxu0 0
    %152 = vmatpush1.bf16.msra.mxu0 0
    %153 = vmatprep.subr.bf16.mxu0 0
    %154 = vmatpush1.bf16.msra.mxu0 %v128
    %155 = vmatprep.subr.bf16.mxu0 0
    %156 = vmatpush1.bf16.msra.mxu0 %v127
    %157 = vmatprep.subr.bf16.mxu0 0
    %158 = vmatpush2.bf16.msra.mxu0 0
    %159 = vmatprep.subr.bf16.mxu0 0
    %160 = vmatpush2.bf16.msra.mxu0 0
    %161 = vmatprep.subr.bf16.mxu0 0
    %162 = vmatpush2.bf16.msra.mxu0 0
    %163 = vmatprep.subr.bf16.mxu0 0
    %164 = vmatpush2.bf16.msra.mxu0 0
    %165 = vmatprep.subr.bf16.mxu0 0
    %166 = vmatpush2.bf16.msra.mxu0 0
    %167 = vmatprep.subr.bf16.mxu0 0
    %168 = vmatpush2.bf16.msra.mxu0 0
    %169 = vmatprep.subr.bf16.mxu0 0
    %170 = vmatpush2.bf16.msra.mxu0 0
    %171 = vmatprep.subr.bf16.mxu0 0
    %172 = vmatpush2.bf16.msra.mxu0 0
    %173 = vmatprep.mubr.bf16.mxu0 0
    %174 = vmatmul.mubr.bf16.gmra.mxu0 %v136
    %v175 = vpop.f32.mrf.mxu0
    %v176 = vadd.f32 %v133, %v175
    %v177 = vpop.f32.mrf.mxu0
    %v178 = vpop.f32.mrf.mxu0
    %v179 = vadd.f32 %v133, %v178
    %v180 = vpop.f32.mrf.mxu0
    %181 = vmatprep.mubr.bf16.mxu0 0
    %182 = vmatmul.mubr.bf16.gmra.mxu0 %v139
    %v183 = vpop.f32.mrf.mxu0
    %v184 = vadd.f32 %v133, %v183
    %v185 = vpop.f32.mrf.mxu0
    %v186 = vpop.f32.mrf.mxu0
    %v187 = vadd.f32 %v133, %v186
    %v188 = vpop.f32.mrf.mxu0
    %189 = vdwg.mxu0
    %v190 = vmax.f32 %v176, 0.0
    %v191 = vmax.f32 %v179, 0.0
    %v192 = vmax.f32 %v184, 0.0
    %v193 = vmax.f32 %v187, 0.0
    %v194 = vld [vmem:[%s1 + $0x10] sm:$0xf]
    %v195 = vld [vmem:[%s1 + $0x14] sm:$0xf]
    %v196 = vld [vmem:[%s1 + $0x18] sm:$0xf]
    %v197 = vld [vmem:[%s1 + $0x1c] sm:$0xf]
    %v198 = vpack.c.bf16 %v191, %v190
    %v199 = vpack.c.bf16 %v193, %v192
    %v200 = vld [vmem:[%s1 + $0x20] sm:$0xf]
    %v201 = vld [vmem:[%s1 + $0x24] sm:$0xf]
    %v202 = vld [vmem:[%s1 + $0x28] sm:$0xf]
    %v203 = vld [vmem:[%s1 + $0x2c] sm:$0xf]
    %204 = vrot.lane.b32.xlu0 %v107, 64
    %v205 = vpop.permute.xlu0 %204
    %206 = vrot.lane.b32.xlu0 %v108, 64
    %v207 = vpop.permute.xlu0 %206
    %v212 = vunpack.c.l.b16 %v200
    %v213 = vunpack.c.l.b16 %v201
    %v214 = vunpack.c.l.b16 %v202
    %v215 = vunpack.c.l.b16 %v203
    %v216 = vpack.c.b16 %v213, %v212
    %v217 = vpack.c.b16 %v215, %v214
    %v221 = vsel %vm58, %v205, 0
    %v224 = vsel %vm58, %v207, 0
    %226 = vmatprep.subr.bf16.mxu0 0
    %227 = vmatpush1.bf16.msra.mxu0 0
    %228 = vmatprep.subr.bf16.mxu0 0
    %229 = vmatpush1.bf16.msra.mxu0 0
    %230 = vmatprep.subr.bf16.mxu0 0
    %231 = vmatpush1.bf16.msra.mxu0 0
    %232 = vmatprep.subr.bf16.mxu0 0
    %233 = vmatpush1.bf16.msra.mxu0 0
    %234 = vmatprep.subr.bf16.mxu0 0
    %235 = vmatpush1.bf16.msra.mxu0 0
    %236 = vmatprep.subr.bf16.mxu0 0
    %237 = vmatpush1.bf16.msra.mxu0 0
    %238 = vmatprep.subr.bf16.mxu0 0
    %239 = vmatpush1.bf16.msra.mxu0 %v217
    %240 = vmatprep.subr.bf16.mxu0 0
    %241 = vmatpush1.bf16.msra.mxu0 %v216
    %242 = vmatprep.subr.bf16.mxu0 0
    %243 = vmatpush2.bf16.msra.mxu0 0
    %244 = vmatprep.subr.bf16.mxu0 0
    %245 = vmatpush2.bf16.msra.mxu0 0
    %246 = vmatprep.subr.bf16.mxu0 0
    %247 = vmatpush2.bf16.msra.mxu0 0
    %248 = vmatprep.subr.bf16.mxu0 0
    %249 = vmatpush2.bf16.msra.mxu0 0
    %250 = vmatprep.subr.bf16.mxu0 0
    %251 = vmatpush2.bf16.msra.mxu0 0
    %252 = vmatprep.subr.bf16.mxu0 0
    %253 = vmatpush2.bf16.msra.mxu0 0
    %254 = vmatprep.subr.bf16.mxu0 0
    %255 = vmatpush2.bf16.msra.mxu0 0
    %256 = vmatprep.subr.bf16.mxu0 0
    %257 = vmatpush2.bf16.msra.mxu0 0
    %258 = vmatprep.mubr.bf16.mxu0 0
    %259 = vmatmul.mubr.bf16.gmra.mxu0 %v221
    %v260 = vpop.f32.mrf.mxu0
    %v261 = vadd.f32 0.0, %v260
    %v262 = vpop.f32.mrf.mxu0
    %v263 = vpop.f32.mrf.mxu0
    %v264 = vadd.f32 0.0, %v263
    %v265 = vpop.f32.mrf.mxu0
    %266 = vmatprep.mubr.bf16.mxu0 0
    %267 = vmatmul.mubr.bf16.gmra.mxu0 %v224
    %v268 = vpop.f32.mrf.mxu0
    %v269 = vadd.f32 0.0, %v268
    %v270 = vpop.f32.mrf.mxu0
    %v271 = vpop.f32.mrf.mxu0
    %v272 = vadd.f32 0.0, %v271
    %v273 = vpop.f32.mrf.mxu0
    %274 = vdwg.mxu0
    %v279 = vunpack.c.l.b16 %v194
    %v280 = vunpack.c.l.b16 %v195
    %v281 = vunpack.c.l.b16 %v196
    %v282 = vunpack.c.l.b16 %v197
    %v283 = vpack.c.b16 %v280, %v279
    %v284 = vpack.c.b16 %v282, %v281
    %v288 = vsel %vm58, %v198, 0
    %v291 = vsel %vm58, %v199, 0
    %293 = vmatprep.subr.bf16.mxu0 0
    %294 = vmatpush1.bf16.msra.mxu0 0
    %295 = vmatprep.subr.bf16.mxu0 0
    %296 = vmatpush1.bf16.msra.mxu0 0
    %297 = vmatprep.subr.bf16.mxu0 0
    %298 = vmatpush1.bf16.msra.mxu0 0
    %299 = vmatprep.subr.bf16.mxu0 0
    %300 = vmatpush1.bf16.msra.mxu0 0
    %301 = vmatprep.subr.bf16.mxu0 0
    %302 = vmatpush1.bf16.msra.mxu0 0
    %303 = vmatprep.subr.bf16.mxu0 0
    %304 = vmatpush1.bf16.msra.mxu0 0
    %305 = vmatprep.subr.bf16.mxu0 0
    %306 = vmatpush1.bf16.msra.mxu0 %v284
    %307 = vmatprep.subr.bf16.mxu0 0
    %308 = vmatpush1.bf16.msra.mxu0 %v283
    %309 = vmatprep.subr.bf16.mxu0 0
    %310 = vmatpush2.bf16.msra.mxu0 0
    %311 = vmatprep.subr.bf16.mxu0 0
    %312 = vmatpush2.bf16.msra.mxu0 0
    %313 = vmatprep.subr.bf16.mxu0 0
    %314 = vmatpush2.bf16.msra.mxu0 0
    %315 = vmatprep.subr.bf16.mxu0 0
    %316 = vmatpush2.bf16.msra.mxu0 0
    %317 = vmatprep.subr.bf16.mxu0 0
    %318 = vmatpush2.bf16.msra.mxu0 0
    %319 = vmatprep.subr.bf16.mxu0 0
    %320 = vmatpush2.bf16.msra.mxu0 0
    %321 = vmatprep.subr.bf16.mxu0 0
    %322 = vmatpush2.bf16.msra.mxu0 0
    %323 = vmatprep.subr.bf16.mxu0 0
    %324 = vmatpush2.bf16.msra.mxu0 0
    %325 = vmatprep.mubr.bf16.mxu0 0
    %326 = vmatmul.mubr.bf16.gmra.mxu0 %v288
    %v327 = vpop.f32.mrf.mxu0
    %v328 = vadd.f32 %v261, %v327
    %v329 = vpop.f32.mrf.mxu0
    %v330 = vpop.f32.mrf.mxu0
    %v331 = vadd.f32 %v264, %v330
    %v332 = vpop.f32.mrf.mxu0
    %333 = vmatprep.mubr.bf16.mxu0 0
    %334 = vmatmul.mubr.bf16.gmra.mxu0 %v291
    %v335 = vpop.f32.mrf.mxu0
    %v336 = vadd.f32 %v269, %v335
    %v337 = vpop.f32.mrf.mxu0
    %v338 = vpop.f32.mrf.mxu0
    %v339 = vadd.f32 %v272, %v338
    %v340 = vpop.f32.mrf.mxu0
    %341 = vdwg.mxu0
    %v342 = vlaneseq
    %v343 = vshrl.u32 %v342, 7
    %v344 = vsub.s32 1, %v343
    %v345 = vrot.slane %v22, %v344
    %347 = vrot.lane.b32.xlu0 %v345, 64
    %v348 = vpop.permute.xlu0 %347
    %v350 = vadd.f32 %v328, %v348
    %v351 = vadd.f32 %v331, %v348
    %v352 = vadd.f32 %v336, %v348
    %v353 = vadd.f32 %v339, %v348
    %v354 = vld [vmem:[%s1 + $0x30] sm:$0xf]
    %v355 = vld [vmem:[%s1 + $0x34] sm:$0xf]
    %v356 = vld [vmem:[%s1 + $0x38] sm:$0xf]
    %v357 = vld [vmem:[%s1 + $0x3c] sm:$0xf]
    %v358 = vpack.c.bf16 %v351, %v350
    %v359 = vld [vmem:[%s1 + $0x40] sm:$0xf]
    %v360 = vld [vmem:[%s1 + $0x44] sm:$0xf]
    %v361 = vld [vmem:[%s1 + $0x48] sm:$0xf]
    %v362 = vld [vmem:[%s1 + $0x4c] sm:$0xf]
    %v363 = vpack.c.bf16 %v353, %v352
    %v368 = vunpack.c.l.b16 %v359
    %v369 = vunpack.c.l.b16 %v360
    %v370 = vunpack.c.l.b16 %v361
    %v371 = vunpack.c.l.b16 %v362
    %v372 = vpack.c.b16 %v369, %v368
    %v373 = vpack.c.b16 %v371, %v370
    %v377 = vsel %vm58, %v363, 0
    %379 = vmatprep.subr.bf16.mxu0 0
    %380 = vmatpush1.bf16.msra.mxu0 0
    %381 = vmatprep.subr.bf16.mxu0 0
    %382 = vmatpush1.bf16.msra.mxu0 0
    %383 = vmatprep.subr.bf16.mxu0 0
    %384 = vmatpush1.bf16.msra.mxu0 0
    %385 = vmatprep.subr.bf16.mxu0 0
    %386 = vmatpush1.bf16.msra.mxu0 0
    %387 = vmatprep.subr.bf16.mxu0 0
    %388 = vmatpush1.bf16.msra.mxu0 0
    %389 = vmatprep.subr.bf16.mxu0 0
    %390 = vmatpush1.bf16.msra.mxu0 0
    %391 = vmatprep.subr.bf16.mxu0 0
    %392 = vmatpush1.bf16.msra.mxu0 %v373
    %393 = vmatprep.subr.bf16.mxu0 0
    %394 = vmatpush1.bf16.msra.mxu0 %v372
    %395 = vmatprep.subr.bf16.mxu0 0
    %396 = vmatpush2.bf16.msra.mxu0 0
    %397 = vmatprep.subr.bf16.mxu0 0
    %398 = vmatpush2.bf16.msra.mxu0 0
    %399 = vmatprep.subr.bf16.mxu0 0
    %400 = vmatpush2.bf16.msra.mxu0 0
    %401 = vmatprep.subr.bf16.mxu0 0
    %402 = vmatpush2.bf16.msra.mxu0 0
    %403 = vmatprep.subr.bf16.mxu0 0
    %404 = vmatpush2.bf16.msra.mxu0 0
    %405 = vmatprep.subr.bf16.mxu0 0
    %406 = vmatpush2.bf16.msra.mxu0 0
    %407 = vmatprep.subr.bf16.mxu0 0
    %408 = vmatpush2.bf16.msra.mxu0 0
    %409 = vmatprep.subr.bf16.mxu0 0
    %410 = vmatpush2.bf16.msra.mxu0 0
    %411 = vmatprep.mubr.bf16.mxu0 0
    %412 = vmatmul.mubr.bf16.gmra.mxu0 %v377
    %v413 = vpop.f32.mrf.mxu0
    %v414 = vadd.f32 0.0, %v413
    %v415 = vpop.f32.mrf.mxu0
    %v416 = vpop.f32.mrf.mxu0
    %v417 = vadd.f32 0.0, %v416
    %v418 = vpop.f32.mrf.mxu0
    %419 = vdwg.mxu0
    %v424 = vunpack.c.l.b16 %v354
    %v425 = vunpack.c.l.b16 %v355
    %v426 = vunpack.c.l.b16 %v356
    %v427 = vunpack.c.l.b16 %v357
    %v428 = vpack.c.b16 %v425, %v424
    %v429 = vpack.c.b16 %v427, %v426
    %v433 = vsel %vm58, %v358, 0
    %435 = vmatprep.subr.bf16.mxu0 0
    %436 = vmatpush1.bf16.msra.mxu0 0
    %437 = vmatprep.subr.bf16.mxu0 0
    %438 = vmatpush1.bf16.msra.mxu0 0
    %439 = vmatprep.subr.bf16.mxu0 0
    %440 = vmatpush1.bf16.msra.mxu0 0
    %441 = vmatprep.subr.bf16.mxu0 0
    %442 = vmatpush1.bf16.msra.mxu0 0
    %443 = vmatprep.subr.bf16.mxu0 0
    %444 = vmatpush1.bf16.msra.mxu0 0
    %445 = vmatprep.subr.bf16.mxu0 0
    %446 = vmatpush1.bf16.msra.mxu0 0
    %447 = vmatprep.subr.bf16.mxu0 0
    %448 = vmatpush1.bf16.msra.mxu0 %v429
    %449 = vmatprep.subr.bf16.mxu0 0
    %450 = vmatpush1.bf16.msra.mxu0 %v428
    %451 = vmatprep.subr.bf16.mxu0 0
    %452 = vmatpush2.bf16.msra.mxu0 0
    %453 = vmatprep.subr.bf16.mxu0 0
    %454 = vmatpush2.bf16.msra.mxu0 0
    %455 = vmatprep.subr.bf16.mxu0 0
    %456 = vmatpush2.bf16.msra.mxu0 0
    %457 = vmatprep.subr.bf16.mxu0 0
    %458 = vmatpush2.bf16.msra.mxu0 0
    %459 = vmatprep.subr.bf16.mxu0 0
    %460 = vmatpush2.bf16.msra.mxu0 0
    %461 = vmatprep.subr.bf16.mxu0 0
    %462 = vmatpush2.bf16.msra.mxu0 0
    %463 = vmatprep.subr.bf16.mxu0 0
    %464 = vmatpush2.bf16.msra.mxu0 0
    %465 = vmatprep.subr.bf16.mxu0 0
    %466 = vmatpush2.bf16.msra.mxu0 0
    %467 = vmatprep.mubr.bf16.mxu0 0
    %468 = vmatmul.mubr.bf16.gmra.mxu0 %v433
    %v469 = vpop.f32.mrf.mxu0
    %v470 = vadd.f32 %v414, %v469
    %v471 = vpop.f32.mrf.mxu0
    %v472 = vpop.f32.mrf.mxu0
    %v473 = vadd.f32 %v417, %v472
    %v474 = vpop.f32.mrf.mxu0
    %475 = vdwg.mxu0
    %v476 = vlaneseq
    %v477 = vshrl.u32 %v476, 7
    %v478 = vsub.s32 2, %v477
    %v479 = vrot.slane %v22, %v478
    %481 = vrot.lane.b32.xlu0 %v479, 64
    %v482 = vpop.permute.xlu0 %481
    %v484 = vadd.f32 %v470, %v482
    %v485 = vadd.f32 %v473, %v482
    %v486 = vadd.f32 %v484, %v18
    %v487 = vadd.f32 %v485, %v19
    %v488 = vld [vmem:[%s1 + $0x50] sm:$0xf]
    %v489 = vld [vmem:[%s1 + $0x54] sm:$0xf]
    %v490 = vld [vmem:[%s1 + $0x58] sm:$0xf]
    %v491 = vld [vmem:[%s1 + $0x5c] sm:$0xf]
    %v492 = vld [vmem:[%s1 + $0x60] sm:$0xf]
    %v493 = vld [vmem:[%s1 + $0x64] sm:$0xf]
    %v494 = vld [vmem:[%s1 + $0x68] sm:$0xf]
    %v495 = vld [vmem:[%s1 + $0x6c] sm:$0xf]
    %497 = vrot.lane.b32.xlu0 %v28, 64
    %v498 = vpop.permute.xlu0 %497
    %v503 = vunpack.c.l.b16 %v492
    %v504 = vunpack.c.l.b16 %v493
    %v505 = vunpack.c.l.b16 %v494
    %v506 = vunpack.c.l.b16 %v495
    %v507 = vpack.c.b16 %v504, %v503
    %v508 = vpack.c.b16 %v506, %v505
    %v512 = vsel %vm58, %v498, 0
    %514 = vmatprep.subr.bf16.mxu0 0
    %515 = vmatpush1.bf16.msra.mxu0 0
    %516 = vmatprep.subr.bf16.mxu0 0
    %517 = vmatpush1.bf16.msra.mxu0 0
    %518 = vmatprep.subr.bf16.mxu0 0
    %519 = vmatpush1.bf16.msra.mxu0 0
    %520 = vmatprep.subr.bf16.mxu0 0
    %521 = vmatpush1.bf16.msra.mxu0 0
    %522 = vmatprep.subr.bf16.mxu0 0
    %523 = vmatpush1.bf16.msra.mxu0 0
    %524 = vmatprep.subr.bf16.mxu0 0
    %525 = vmatpush1.bf16.msra.mxu0 0
    %526 = vmatprep.subr.bf16.mxu0 0
    %527 = vmatpush1.bf16.msra.mxu0 %v508
    %528 = vmatprep.subr.bf16.mxu0 0
    %529 = vmatpush1.bf16.msra.mxu0 %v507
    %530 = vmatprep.subr.bf16.mxu0 0
    %531 = vmatpush2.bf16.msra.mxu0 0
    %532 = vmatprep.subr.bf16.mxu0 0
    %533 = vmatpush2.bf16.msra.mxu0 0
    %534 = vmatprep.subr.bf16.mxu0 0
    %535 = vmatpush2.bf16.msra.mxu0 0
    %536 = vmatprep.subr.bf16.mxu0 0
    %537 = vmatpush2.bf16.msra.mxu0 0
    %538 = vmatprep.subr.bf16.mxu0 0
    %539 = vmatpush2.bf16.msra.mxu0 0
    %540 = vmatprep.subr.bf16.mxu0 0
    %541 = vmatpush2.bf16.msra.mxu0 0
    %542 = vmatprep.subr.bf16.mxu0 0
    %543 = vmatpush2.bf16.msra.mxu0 0
    %544 = vmatprep.subr.bf16.mxu0 0
    %545 = vmatpush2.bf16.msra.mxu0 0
    %546 = vmatprep.mubr.bf16.mxu0 0
    %547 = vmatmul.mubr.bf16.gmra.mxu0 %v512
    %v548 = vpop.f32.mrf.mxu0
    %v549 = vadd.f32 0.0, %v548
    %v550 = vpop.f32.mrf.mxu0
    %v551 = vpop.f32.mrf.mxu0
    %v552 = vadd.f32 0.0, %v551
    %v553 = vpop.f32.mrf.mxu0
    %554 = vdwg.mxu0
    %v559 = vunpack.c.l.b16 %v488
    %v560 = vunpack.c.l.b16 %v489
    %v561 = vunpack.c.l.b16 %v490
    %v562 = vunpack.c.l.b16 %v491
    %v563 = vpack.c.b16 %v560, %v559
    %v564 = vpack.c.b16 %v562, %v561
    %v568 = vsel %vm58, %v107, 0
    %570 = vmatprep.subr.bf16.mxu0 0
    %571 = vmatpush1.bf16.msra.mxu0 0
    %572 = vmatprep.subr.bf16.mxu0 0
    %573 = vmatpush1.bf16.msra.mxu0 0
    %574 = vmatprep.subr.bf16.mxu0 0
    %575 = vmatpush1.bf16.msra.mxu0 0
    %576 = vmatprep.subr.bf16.mxu0 0
    %577 = vmatpush1.bf16.msra.mxu0 0
    %578 = vmatprep.subr.bf16.mxu0 0
    %579 = vmatpush1.bf16.msra.mxu0 0
    %580 = vmatprep.subr.bf16.mxu0 0
    %581 = vmatpush1.bf16.msra.mxu0 0
    %582 = vmatprep.subr.bf16.mxu0 0
    %583 = vmatpush1.bf16.msra.mxu0 %v564
    %584 = vmatprep.subr.bf16.mxu0 0
    %585 = vmatpush1.bf16.msra.mxu0 %v563
    %586 = vmatprep.subr.bf16.mxu0 0
    %587 = vmatpush2.bf16.msra.mxu0 0
    %588 = vmatprep.subr.bf16.mxu0 0
    %589 = vmatpush2.bf16.msra.mxu0 0
    %590 = vmatprep.subr.bf16.mxu0 0
    %591 = vmatpush2.bf16.msra.mxu0 0
    %592 = vmatprep.subr.bf16.mxu0 0
    %593 = vmatpush2.bf16.msra.mxu0 0
    %594 = vmatprep.subr.bf16.mxu0 0
    %595 = vmatpush2.bf16.msra.mxu0 0
    %596 = vmatprep.subr.bf16.mxu0 0
    %597 = vmatpush2.bf16.msra.mxu0 0
    %598 = vmatprep.subr.bf16.mxu0 0
    %599 = vmatpush2.bf16.msra.mxu0 0
    %600 = vmatprep.subr.bf16.mxu0 0
    %601 = vmatpush2.bf16.msra.mxu0 0
    %602 = vmatprep.mubr.bf16.mxu0 0
    %603 = vmatmul.mubr.bf16.gmra.mxu0 %v568
    %v604 = vpop.f32.mrf.mxu0
    %v605 = vadd.f32 %v549, %v604
    %v606 = vpop.f32.mrf.mxu0
    %v607 = vpop.f32.mrf.mxu0
    %v608 = vadd.f32 %v552, %v607
    %v609 = vpop.f32.mrf.mxu0
    %610 = vdwg.mxu0
    %v611 = vlaneseq
    %v612 = vshrl.u32 %v611, 7
    %v613 = vsub.s32 3, %v612
    %v614 = vrot.slane %v22, %v613
    %616 = vrot.lane.b32.xlu0 %v614, 64
    %v617 = vpop.permute.xlu0 %616
    %v619 = vadd.f32 %v605, %v617
    %v620 = vadd.f32 %v608, %v617
    %v621 = vadd.f32 %v619, %v18
    %v622 = vadd.f32 %v620, %v19
    %v623 = vld [vmem:[%s1 + $0x70] sm:$0xf]
    %v624 = vld [vmem:[%s1 + $0x74] sm:$0xf]
    %v625 = vld [vmem:[%s1 + $0x78] sm:$0xf]
    %v626 = vld [vmem:[%s1 + $0x7c] sm:$0xf]
    %v627 = vpack.c.bf16 %v487, %v486
    %v628 = vld [vmem:[%s1 + $0x80] sm:$0xf]
    %v629 = vld [vmem:[%s1 + $0x84] sm:$0xf]
    %v630 = vld [vmem:[%s1 + $0x88] sm:$0xf]
    %v631 = vld [vmem:[%s1 + $0x8c] sm:$0xf]
    %v632 = vpack.c.bf16 %v622, %v621
    %v637 = vunpack.c.l.b16 %v628
    %v638 = vunpack.c.l.b16 %v629
    %v639 = vunpack.c.l.b16 %v630
    %v640 = vunpack.c.l.b16 %v631
    %v641 = vpack.c.b16 %v638, %v637
    %v642 = vpack.c.b16 %v640, %v639
    %v646 = vsel %vm58, %v632, 0
    %648 = vmatprep.subr.bf16.mxu0 0
    %649 = vmatpush1.bf16.msra.mxu0 0
    %650 = vmatprep.subr.bf16.mxu0 0
    %651 = vmatpush1.bf16.msra.mxu0 0
    %652 = vmatprep.subr.bf16.mxu0 0
    %653 = vmatpush1.bf16.msra.mxu0 0
    %654 = vmatprep.subr.bf16.mxu0 0
    %655 = vmatpush1.bf16.msra.mxu0 0
    %656 = vmatprep.subr.bf16.mxu0 0
    %657 = vmatpush1.bf16.msra.mxu0 0
    %658 = vmatprep.subr.bf16.mxu0 0
    %659 = vmatpush1.bf16.msra.mxu0 0
    %660 = vmatprep.subr.bf16.mxu0 0
    %661 = vmatpush1.bf16.msra.mxu0 %v642
    %662 = vmatprep.subr.bf16.mxu0 0
    %663 = vmatpush1.bf16.msra.mxu0 %v641
    %664 = vmatprep.subr.bf16.mxu0 0
    %665 = vmatpush2.bf16.msra.mxu0 0
    %666 = vmatprep.subr.bf16.mxu0 0
    %667 = vmatpush2.bf16.msra.mxu0 0
    %668 = vmatprep.subr.bf16.mxu0 0
    %669 = vmatpush2.bf16.msra.mxu0 0
    %670 = vmatprep.subr.bf16.mxu0 0
    %671 = vmatpush2.bf16.msra.mxu0 0
    %672 = vmatprep.subr.bf16.mxu0 0
    %673 = vmatpush2.bf16.msra.mxu0 0
    %674 = vmatprep.subr.bf16.mxu0 0
    %675 = vmatpush2.bf16.msra.mxu0 0
    %676 = vmatprep.subr.bf16.mxu0 0
    %677 = vmatpush2.bf16.msra.mxu0 0
    %678 = vmatprep.subr.bf16.mxu0 0
    %679 = vmatpush2.bf16.msra.mxu0 0
    %680 = vmatprep.mubr.bf16.mxu0 0
    %681 = vmatmul.mubr.bf16.gmra.mxu0 %v646
    %v682 = vpop.f32.mrf.mxu0
    %v683 = vadd.f32 0.0, %v682
    %v684 = vpop.f32.mrf.mxu0
    %v685 = vpop.f32.mrf.mxu0
    %v686 = vadd.f32 0.0, %v685
    %v687 = vpop.f32.mrf.mxu0
    %688 = vdwg.mxu0
    %v693 = vunpack.c.l.b16 %v623
    %v694 = vunpack.c.l.b16 %v624
    %v695 = vunpack.c.l.b16 %v625
    %v696 = vunpack.c.l.b16 %v626
    %v697 = vpack.c.b16 %v694, %v693
    %v698 = vpack.c.b16 %v696, %v695
    %v702 = vsel %vm58, %v627, 0
    %704 = vmatprep.subr.bf16.mxu0 0
    %705 = vmatpush1.bf16.msra.mxu0 0
    %706 = vmatprep.subr.bf16.mxu0 0
    %707 = vmatpush1.bf16.msra.mxu0 0
    %708 = vmatprep.subr.bf16.mxu0 0
    %709 = vmatpush1.bf16.msra.mxu0 0
    %710 = vmatprep.subr.bf16.mxu0 0
    %711 = vmatpush1.bf16.msra.mxu0 0
    %712 = vmatprep.subr.bf16.mxu0 0
    %713 = vmatpush1.bf16.msra.mxu0 0
    %714 = vmatprep.subr.bf16.mxu0 0
    %715 = vmatpush1.bf16.msra.mxu0 0
    %716 = vmatprep.subr.bf16.mxu0 0
    %717 = vmatpush1.bf16.msra.mxu0 %v698
    %718 = vmatprep.subr.bf16.mxu0 0
    %719 = vmatpush1.bf16.msra.mxu0 %v697
    %720 = vmatprep.subr.bf16.mxu0 0
    %721 = vmatpush2.bf16.msra.mxu0 0
    %722 = vmatprep.subr.bf16.mxu0 0
    %723 = vmatpush2.bf16.msra.mxu0 0
    %724 = vmatprep.subr.bf16.mxu0 0
    %725 = vmatpush2.bf16.msra.mxu0 0
    %726 = vmatprep.subr.bf16.mxu0 0
    %727 = vmatpush2.bf16.msra.mxu0 0
    %728 = vmatprep.subr.bf16.mxu0 0
    %729 = vmatpush2.bf16.msra.mxu0 0
    %730 = vmatprep.subr.bf16.mxu0 0
    %731 = vmatpush2.bf16.msra.mxu0 0
    %732 = vmatprep.subr.bf16.mxu0 0
    %733 = vmatpush2.bf16.msra.mxu0 0
    %734 = vmatprep.subr.bf16.mxu0 0
    %735 = vmatpush2.bf16.msra.mxu0 0
    %736 = vmatprep.mubr.bf16.mxu0 0
    %737 = vmatmul.mubr.bf16.gmra.mxu0 %v702
    %v738 = vpop.f32.mrf.mxu0
    %v739 = vadd.f32 %v683, %v738
    %v740 = vpop.f32.mrf.mxu0
    %v741 = vpop.f32.mrf.mxu0
    %v742 = vadd.f32 %v686, %v741
    %v743 = vpop.f32.mrf.mxu0
    %744 = vdwg.mxu0
    %v745 = vlaneseq
    %v746 = vshrl.u32 %v745, 7
    %v747 = vsub.s32 4, %v746
    %v748 = vrot.slane %v22, %v747
    %750 = vrot.lane.b32.xlu0 %v748, 64
    %v751 = vpop.permute.xlu0 %750
    %v753 = vadd.f32 %v739, %v751
    %v754 = vadd.f32 %v742, %v751
    %v755 = vld [vmem:[%s2] sm:$0xff]
    %v756 = vld [vmem:[%s2 + $0x8] sm:$0xff]
    %v757 = vld [vmem:[%s2 + $0x10] sm:$0xff]
    %v758 = vld [vmem:[%s2 + $0x18] sm:$0xff]
    %v759 = vpack.c.bf16 %v754, %v753
    %v764 = vunpack.c.l.b16 %v755
    %v765 = vunpack.c.h.b16 %v755
    %v766 = vunpack.c.l.b16 %v756
    %v767 = vunpack.c.h.b16 %v756
    %v768 = vunpack.c.l.b16 %v757
    %v769 = vunpack.c.h.b16 %v757
    %v770 = vunpack.c.l.b16 %v758
    %v771 = vunpack.c.h.b16 %v758
    %v772 = vpack.c.b16 %v766, %v764
    %v773 = vpack.c.b16 %v767, %v765
    %v774 = vpack.c.b16 %v770, %v768
    %v775 = vpack.c.b16 %v771, %v769
    %v781 = vsel %vm58, %v759, 0
    %783 = vmatprep.subr.bf16.mxu0 0
    %784 = vmatpush1.bf16.msra.mxu0 0
    %785 = vmatprep.subr.bf16.mxu0 0
    %786 = vmatpush1.bf16.msra.mxu0 0
    %787 = vmatprep.subr.bf16.mxu0 0
    %788 = vmatpush1.bf16.msra.mxu0 0
    %789 = vmatprep.subr.bf16.mxu0 0
    %790 = vmatpush1.bf16.msra.mxu0 0
    %791 = vmatprep.subr.bf16.mxu0 0
    %792 = vmatpush1.bf16.msra.mxu0 0
    %793 = vmatprep.subr.bf16.mxu0 0
    %794 = vmatpush1.bf16.msra.mxu0 0
    %795 = vmatprep.subr.bf16.mxu0 %v775
    %796 = vmatpush1.bf16.msra.mxu0 %v774
    %797 = vmatprep.subr.bf16.mxu0 %v773
    %798 = vmatpush1.bf16.msra.mxu0 %v772
    %799 = vmatprep.subr.bf16.mxu0 0
    %800 = vmatpush2.bf16.msra.mxu0 0
    %801 = vmatprep.subr.bf16.mxu0 0
    %802 = vmatpush2.bf16.msra.mxu0 0
    %803 = vmatprep.subr.bf16.mxu0 0
    %804 = vmatpush2.bf16.msra.mxu0 0
    %805 = vmatprep.subr.bf16.mxu0 0
    %806 = vmatpush2.bf16.msra.mxu0 0
    %807 = vmatprep.subr.bf16.mxu0 0
    %808 = vmatpush2.bf16.msra.mxu0 0
    %809 = vmatprep.subr.bf16.mxu0 0
    %810 = vmatpush2.bf16.msra.mxu0 0
    %811 = vmatprep.subr.bf16.mxu0 0
    %812 = vmatpush2.bf16.msra.mxu0 0
    %813 = vmatprep.subr.bf16.mxu0 0
    %814 = vmatpush2.bf16.msra.mxu0 0
    %815 = vmatprep.mubr.bf16.mxu0 0
    %816 = vmatmul.mubr.bf16.gmra.mxu0 %v781
    %v817 = vpop.f32.mrf.mxu0
    %v818 = vadd.f32 0.0, %v817
    %v819 = vpop.f32.mrf.mxu0
    %v820 = vadd.f32 0.0, %v819
    %v821 = vpop.f32.mrf.mxu0
    %v822 = vadd.f32 0.0, %v821
    %v823 = vpop.f32.mrf.mxu0
    %v824 = vadd.f32 0.0, %v823
    %825 = vdwg.mxu0
    %828 = vrot.lane.b32.xlu0 %v818, 96
    %v829 = vpop.permute.xlu0 %828
    %830 = vrot.lane.b32.xlu0 %v822, 96
    %v831 = vpop.permute.xlu0 %830
    %836 = vrot.lane.b32.xlu0 %v820, 96
    %v837 = vpop.permute.xlu0 %836
    %838 = vrot.lane.b32.xlu0 %v824, 96
    %v839 = vpop.permute.xlu0 %838
    %v842 = vpack.c.bf16 %v818, %v818
    %v843 = vpack.c.bf16 %v822, %v822
    %v844 = vpack.c.bf16 %v829, %v829
    %v845 = vpack.c.bf16 %v831, %v831
    %847 = vrot.lane.b32.xlu0 %v842, 64
    %v848 = vpop.permute.xlu0 %847
    %v850 = vsel %vm58, %v842, 0
    %v853 = vsel %vm58, %v848, 0
    %855 = vmatprep.subr.bf16.mxu0 0
    %856 = vmatpush1.bf16.xpose.msra.mxu0 0
    %857 = vmatprep.subr.bf16.mxu0 0
    %858 = vmatpush1.bf16.xpose.msra.mxu0 0
    %859 = vmatprep.subr.bf16.mxu0 0
    %860 = vmatpush1.bf16.xpose.msra.mxu0 0
    %861 = vmatprep.subr.bf16.mxu0 0
    %862 = vmatpush1.bf16.xpose.msra.mxu0 0
    %863 = vmatprep.subr.bf16.mxu0 0
    %864 = vmatpush1.bf16.xpose.msra.mxu0 0
    %865 = vmatprep.subr.bf16.mxu0 0
    %866 = vmatpush1.bf16.xpose.msra.mxu0 0
    %867 = vmatprep.subr.bf16.mxu0 0
    %868 = vmatpush1.bf16.xpose.msra.mxu0 0
    %869 = vmatprep.subr.bf16.mxu0 0
    %870 = vmatpush1.bf16.xpose.msra.mxu0 %v853
    %871 = vmatprep.subr.bf16.mxu0 0
    %872 = vmatpush2.bf16.xpose.msra.mxu0 0
    %873 = vmatprep.subr.bf16.mxu0 0
    %874 = vmatpush2.bf16.xpose.msra.mxu0 0
    %875 = vmatprep.subr.bf16.mxu0 0
    %876 = vmatpush2.bf16.xpose.msra.mxu0 0
    %877 = vmatprep.subr.bf16.mxu0 0
    %878 = vmatpush2.bf16.xpose.msra.mxu0 0
    %879 = vmatprep.subr.bf16.mxu0 0
    %880 = vmatpush2.bf16.xpose.msra.mxu0 0
    %881 = vmatprep.subr.bf16.mxu0 0
    %882 = vmatpush2.bf16.xpose.msra.mxu0 0
    %883 = vmatprep.subr.bf16.mxu0 0
    %884 = vmatpush2.bf16.xpose.msra.mxu0 0
    %885 = vmatprep.subr.bf16.mxu0 0
    %886 = vmatpush2.bf16.xpose.msra.mxu0 0
    %887 = vmatprep.mubr.bf16.mxu0 0
    %888 = vmatmul.mubr.bf16.gmra.mxu0 %v850
    %v889 = vpop.f32.mrf.mxu0
    %v890 = vadd.f32 0.0, %v889
    %v891 = vpop.f32.mrf.mxu0
    %v892 = vpop.f32.mrf.mxu0
    %v893 = vpop.f32.mrf.mxu0
    %894 = vdwg.mxu0
    %896 = vrot.lane.b32.xlu0 %v843, 64
    %v897 = vpop.permute.xlu0 %896
    %v899 = vsel %vm58, %v843, 0
    %v902 = vsel %vm58, %v897, 0
    %904 = vmatprep.subr.bf16.mxu0 0
    %905 = vmatpush1.bf16.xpose.msra.mxu0 0
    %906 = vmatprep.subr.bf16.mxu0 0
    %907 = vmatpush1.bf16.xpose.msra.mxu0 0
    %908 = vmatprep.subr.bf16.mxu0 0
    %909 = vmatpush1.bf16.xpose.msra.mxu0 0
    %910 = vmatprep.subr.bf16.mxu0 0
    %911 = vmatpush1.bf16.xpose.msra.mxu0 0
    %912 = vmatprep.subr.bf16.mxu0 0
    %913 = vmatpush1.bf16.xpose.msra.mxu0 0
    %914 = vmatprep.subr.bf16.mxu0 0
    %915 = vmatpush1.bf16.xpose.msra.mxu0 0
    %916 = vmatprep.subr.bf16.mxu0 0
    %917 = vmatpush1.bf16.xpose.msra.mxu0 0
    %918 = vmatprep.subr.bf16.mxu0 0
    %919 = vmatpush1.bf16.xpose.msra.mxu0 %v902
    %920 = vmatprep.subr.bf16.mxu0 0
    %921 = vmatpush2.bf16.xpose.msra.mxu0 0
    %922 = vmatprep.subr.bf16.mxu0 0
    %923 = vmatpush2.bf16.xpose.msra.mxu0 0
    %924 = vmatprep.subr.bf16.mxu0 0
    %925 = vmatpush2.bf16.xpose.msra.mxu0 0
    %926 = vmatprep.subr.bf16.mxu0 0
    %927 = vmatpush2.bf16.xpose.msra.mxu0 0
    %928 = vmatprep.subr.bf16.mxu0 0
    %929 = vmatpush2.bf16.xpose.msra.mxu0 0
    %930 = vmatprep.subr.bf16.mxu0 0
    %931 = vmatpush2.bf16.xpose.msra.mxu0 0
    %932 = vmatprep.subr.bf16.mxu0 0
    %933 = vmatpush2.bf16.xpose.msra.mxu0 0
    %934 = vmatprep.subr.bf16.mxu0 0
    %935 = vmatpush2.bf16.xpose.msra.mxu0 0
    %936 = vmatprep.mubr.bf16.mxu0 0
    %937 = vmatmul.mubr.bf16.gmra.mxu0 %v899
    %v938 = vpop.f32.mrf.mxu0
    %v939 = vadd.f32 0.0, %v938
    %v940 = vpop.f32.mrf.mxu0
    %v941 = vpop.f32.mrf.mxu0
    %v942 = vpop.f32.mrf.mxu0
    %943 = vdwg.mxu0
    %945 = vrot.lane.b32.xlu0 %v844, 64
    %v946 = vpop.permute.xlu0 %945
    %v948 = vsel %vm58, %v844, 0
    %v951 = vsel %vm58, %v946, 0
    %953 = vmatprep.subr.bf16.mxu0 0
    %954 = vmatpush1.bf16.xpose.msra.mxu0 0
    %955 = vmatprep.subr.bf16.mxu0 0
    %956 = vmatpush1.bf16.xpose.msra.mxu0 0
    %957 = vmatprep.subr.bf16.mxu0 0
    %958 = vmatpush1.bf16.xpose.msra.mxu0 0
    %959 = vmatprep.subr.bf16.mxu0 0
    %960 = vmatpush1.bf16.xpose.msra.mxu0 0
    %961 = vmatprep.subr.bf16.mxu0 0
    %962 = vmatpush1.bf16.xpose.msra.mxu0 0
    %963 = vmatprep.subr.bf16.mxu0 0
    %964 = vmatpush1.bf16.xpose.msra.mxu0 0
    %965 = vmatprep.subr.bf16.mxu0 0
    %966 = vmatpush1.bf16.xpose.msra.mxu0 0
    %967 = vmatprep.subr.bf16.mxu0 0
    %968 = vmatpush1.bf16.xpose.msra.mxu0 %v951
    %969 = vmatprep.subr.bf16.mxu0 0
    %970 = vmatpush2.bf16.xpose.msra.mxu0 0
    %971 = vmatprep.subr.bf16.mxu0 0
    %972 = vmatpush2.bf16.xpose.msra.mxu0 0
    %973 = vmatprep.subr.bf16.mxu0 0
    %974 = vmatpush2.bf16.xpose.msra.mxu0 0
    %975 = vmatprep.subr.bf16.mxu0 0
    %976 = vmatpush2.bf16.xpose.msra.mxu0 0
    %977 = vmatprep.subr.bf16.mxu0 0
    %978 = vmatpush2.bf16.xpose.msra.mxu0 0
    %979 = vmatprep.subr.bf16.mxu0 0
    %980 = vmatpush2.bf16.xpose.msra.mxu0 0
    %981 = vmatprep.subr.bf16.mxu0 0
    %982 = vmatpush2.bf16.xpose.msra.mxu0 0
    %983 = vmatprep.subr.bf16.mxu0 0
    %984 = vmatpush2.bf16.xpose.msra.mxu0 0
    %985 = vmatprep.mubr.bf16.mxu0 0
    %986 = vmatmul.mubr.bf16.gmra.mxu0 %v948
    %v987 = vpop.f32.mrf.mxu0
    %v988 = vadd.f32 0.0, %v987
    %v989 = vpop.f32.mrf.mxu0
    %v990 = vpop.f32.mrf.mxu0
    %v991 = vpop.f32.mrf.mxu0
    %992 = vdwg.mxu0
    %994 = vrot.lane.b32.xlu0 %v845, 64
    %v995 = vpop.permute.xlu0 %994
    %v997 = vsel %vm58, %v845, 0
    %v1000 = vsel %vm58, %v995, 0
    %1002 = vmatprep.subr.bf16.mxu0 0
    %1003 = vmatpush1.bf16.xpose.msra.mxu0 0
    %1004 = vmatprep.subr.bf16.mxu0 0
    %1005 = vmatpush1.bf16.xpose.msra.mxu0 0
    %1006 = vmatprep.subr.bf16.mxu0 0
    %1007 = vmatpush1.bf16.xpose.msra.mxu0 0
    %1008 = vmatprep.subr.bf16.mxu0 0
    %1009 = vmatpush1.bf16.xpose.msra.mxu0 0
    %1010 = vmatprep.subr.bf16.mxu0 0
    %1011 = vmatpush1.bf16.xpose.msra.mxu0 0
    %1012 = vmatprep.subr.bf16.mxu0 0
    %1013 = vmatpush1.bf16.xpose.msra.mxu0 0
    %1014 = vmatprep.subr.bf16.mxu0 0
    %1015 = vmatpush1.bf16.xpose.msra.mxu0 0
    %1016 = vmatprep.subr.bf16.mxu0 0
    %1017 = vmatpush1.bf16.xpose.msra.mxu0 %v1000
    %1018 = vmatprep.subr.bf16.mxu0 0
    %1019 = vmatpush2.bf16.xpose.msra.mxu0 0
    %1020 = vmatprep.subr.bf16.mxu0 0
    %1021 = vmatpush2.bf16.xpose.msra.mxu0 0
    %1022 = vmatprep.subr.bf16.mxu0 0
    %1023 = vmatpush2.bf16.xpose.msra.mxu0 0
    %1024 = vmatprep.subr.bf16.mxu0 0
    %1025 = vmatpush2.bf16.xpose.msra.mxu0 0
    %1026 = vmatprep.subr.bf16.mxu0 0
    %1027 = vmatpush2.bf16.xpose.msra.mxu0 0
    %1028 = vmatprep.subr.bf16.mxu0 0
    %1029 = vmatpush2.bf16.xpose.msra.mxu0 0
    %1030 = vmatprep.subr.bf16.mxu0 0
    %1031 = vmatpush2.bf16.xpose.msra.mxu0 0
    %1032 = vmatprep.subr.bf16.mxu0 0
    %1033 = vmatpush2.bf16.xpose.msra.mxu0 0
    %1034 = vmatprep.mubr.bf16.mxu0 0
    %1035 = vmatmul.mubr.bf16.gmra.mxu0 %v997
    %v1036 = vpop.f32.mrf.mxu0
    %v1037 = vadd.f32 0.0, %v1036
    %v1038 = vpop.f32.mrf.mxu0
    %v1039 = vpop.f32.mrf.mxu0
    %v1040 = vpop.f32.mrf.mxu0
    %1041 = vdwg.mxu0
    %v1042 = vmul.f32 %v890, 0.17677669
    %v1043 = vmul.f32 %v939, 0.17677669
    %v1044 = vmul.f32 %v988, 0.17677669
    %v1045 = vmul.f32 %v1037, 0.17677669
    %1050 = vrot.lane.b32.xlu0 %v20, 96
    %v1051 = vpop.permute.xlu0 %1050
    %1052 = vrot.lane.b32.xlu0 %v21, 96
    %v1053 = vpop.permute.xlu0 %1052
    %1054 = vrot.lane.b32.xlu0 %v22, 96
    %v1055 = vpop.permute.xlu0 %1054
    %1056 = vrot.lane.b32.xlu0 %v23, 96
    %v1057 = vpop.permute.xlu0 %1056
    %v1062 = vadd.f32 %v1042, %v1051
    %v1063 = vadd.f32 %v1043, %v1053
    %v1064 = vadd.f32 %v1044, %v1055
    %v1065 = vadd.f32 %v1045, %v1057
    %vm1066 = vcmask 64512
    %v1067 = vsel %vm1066, %v1062, -inf
    %1068 = vmax.xlane.f32.xlu0 %v1067
    %v1069 = vpop.xlane.xlu0 %1068
    %v1070 = vsel %vm1066, %v1063, -inf
    %1071 = vmax.xlane.f32.xlu0 %v1070
    %v1072 = vpop.xlane.xlu0 %1071
    %v1073 = vsel %vm1066, %v1064, -inf
    %1074 = vmax.xlane.f32.xlu0 %v1073
    %v1075 = vpop.xlane.xlu0 %1074
    %v1076 = vsel %vm1066, %v1065, -inf
    %1077 = vmax.xlane.f32.xlu0 %v1076
    %v1078 = vpop.xlane.xlu0 %1077
    %v1079 = vsub.f32 %v1062, %v1069
    %v1080 = vsub.f32 %v1063, %v1072
    %v1081 = vsub.f32 %v1064, %v1075
    %v1082 = vsub.f32 %v1065, %v1078
    %v1083 = vmul.f32 %v1079, 1.442695
    %v1084 = vpow.pop %v1083
    %v1085 = vmul.f32 %v1080, 1.442695
    %v1086 = vpow.pop %v1085
    %v1087 = vmul.f32 %v1081, 1.442695
    %v1088 = vpow.pop %v1087
    %v1089 = vmul.f32 %v1082, 1.442695
    %v1090 = vpow.pop %v1089
    %v1091 = vsel %vm1066, %v1084, 0.0
    %1092 = vadd.xlane.f32.xlu0 %v1091
    %v1093 = vpop.xlane.xlu0 %1092
    %v1094 = vsel %vm1066, %v1086, 0.0
    %1095 = vadd.xlane.f32.xlu0 %v1094
    %v1096 = vpop.xlane.xlu0 %1095
    %v1097 = vsel %vm1066, %v1088, 0.0
    %1098 = vadd.xlane.f32.xlu0 %v1097
    %v1099 = vpop.xlane.xlu0 %1098
    %v1100 = vsel %vm1066, %v1090, 0.0
    %1101 = vadd.xlane.f32.xlu0 %v1100
    %v1102 = vpop.xlane.xlu0 %1101
    %v1103 = vrcp.pop %v1093
    %v1104 = vrcp.pop %v1096
    %v1105 = vrcp.pop %v1099
    %v1106 = vrcp.pop %v1102
    %v1107 = vmul.f32 %v1084, %v1103
    %v1108 = vmul.f32 %v1086, %v1104
    %v1109 = vmul.f32 %v1088, %v1105
    %v1110 = vmul.f32 %v1090, %v1106
    %v1111 = vpack.c.bf16 %v1107, %v1107
    %v1112 = vpack.c.bf16 %v1108, %v1108
    %v1113 = vpack.c.bf16 %v1109, %v1109
    %v1114 = vpack.c.bf16 %v1110, %v1110
    %v1115 = vpack.c.bf16 %v820, %v820
    %v1116 = vpack.c.bf16 %v824, %v824
    %v1117 = vpack.c.bf16 %v837, %v837
    %v1118 = vpack.c.bf16 %v839, %v839
    %v1120 = vsel %vm1066, %v1111, 0
    %vm1122 = vcmask 1043456
    %v1124 = vsel %vm1122, %v1115, 0
    %1126 = vmatprep.subr.bf16.mxu0 0
    %1127 = vmatpush1.bf16.msra.mxu0 0
    %1128 = vmatprep.subr.bf16.mxu0 0
    %1129 = vmatpush1.bf16.msra.mxu0 0
    %1130 = vmatprep.subr.bf16.mxu0 0
    %1131 = vmatpush1.bf16.msra.mxu0 0
    %1132 = vmatprep.subr.bf16.mxu0 0
    %1133 = vmatpush1.bf16.msra.mxu0 0
    %1134 = vmatprep.subr.bf16.mxu0 0
    %1135 = vmatpush1.bf16.msra.mxu0 0
    %1136 = vmatprep.subr.bf16.mxu0 0
    %1137 = vmatpush1.bf16.msra.mxu0 0
    %1138 = vmatprep.subr.bf16.mxu0 0
    %1139 = vmatpush1.bf16.msra.mxu0 0
    %1140 = vmatprep.subr.bf16.mxu0 0
    %1141 = vmatpush1.bf16.msra.mxu0 %v1124
    %1142 = vmatprep.subr.bf16.mxu0 0
    %1143 = vmatpush2.bf16.msra.mxu0 0
    %1144 = vmatprep.subr.bf16.mxu0 0
    %1145 = vmatpush2.bf16.msra.mxu0 0
    %1146 = vmatprep.subr.bf16.mxu0 0
    %1147 = vmatpush2.bf16.msra.mxu0 0
    %1148 = vmatprep.subr.bf16.mxu0 0
    %1149 = vmatpush2.bf16.msra.mxu0 0
    %1150 = vmatprep.subr.bf16.mxu0 0
    %1151 = vmatpush2.bf16.msra.mxu0 0
    %1152 = vmatprep.subr.bf16.mxu0 0
    %1153 = vmatpush2.bf16.msra.mxu0 0
    %1154 = vmatprep.subr.bf16.mxu0 0
    %1155 = vmatpush2.bf16.msra.mxu0 0
    %1156 = vmatprep.subr.bf16.mxu0 0
    %1157 = vmatpush2.bf16.msra.mxu0 0
    %1158 = vmatprep.mubr.bf16.mxu0 0
    %1159 = vmatmul.mubr.bf16.gmra.mxu0 %v1120
    %v1160 = vpop.f32.mrf.mxu0
    %v1161 = vadd.f32 0.0, %v1160
    %v1162 = vpop.f32.mrf.mxu0
    %v1163 = vpop.f32.mrf.mxu0
    %v1164 = vpop.f32.mrf.mxu0
    %1165 = vdwg.mxu0
    %v1167 = vsel %vm1066, %v1112, 0
    %v1170 = vsel %vm1122, %v1116, 0
    %1172 = vmatprep.subr.bf16.mxu0 0
    %1173 = vmatpush1.bf16.msra.mxu0 0
    %1174 = vmatprep.subr.bf16.mxu0 0
    %1175 = vmatpush1.bf16.msra.mxu0 0
    %1176 = vmatprep.subr.bf16.mxu0 0
    %1177 = vmatpush1.bf16.msra.mxu0 0
    %1178 = vmatprep.subr.bf16.mxu0 0
    %1179 = vmatpush1.bf16.msra.mxu0 0
    %1180 = vmatprep.subr.bf16.mxu0 0
    %1181 = vmatpush1.bf16.msra.mxu0 0
    %1182 = vmatprep.subr.bf16.mxu0 0
    %1183 = vmatpush1.bf16.msra.mxu0 0
    %1184 = vmatprep.subr.bf16.mxu0 0
    %1185 = vmatpush1.bf16.msra.mxu0 0
    %1186 = vmatprep.subr.bf16.mxu0 0
    %1187 = vmatpush1.bf16.msra.mxu0 %v1170
    %1188 = vmatprep.subr.bf16.mxu0 0
    %1189 = vmatpush2.bf16.msra.mxu0 0
    %1190 = vmatprep.subr.bf16.mxu0 0
    %1191 = vmatpush2.bf16.msra.mxu0 0
    %1192 = vmatprep.subr.bf16.mxu0 0
    %1193 = vmatpush2.bf16.msra.mxu0 0
    %1194 = vmatprep.subr.bf16.mxu0 0
    %1195 = vmatpush2.bf16.msra.mxu0 0
    %1196 = vmatprep.subr.bf16.mxu0 0
    %1197 = vmatpush2.bf16.msra.mxu0 0
    %1198 = vmatprep.subr.bf16.mxu0 0
    %1199 = vmatpush2.bf16.msra.mxu0 0
    %1200 = vmatprep.subr.bf16.mxu0 0
    %1201 = vmatpush2.bf16.msra.mxu0 0
    %1202 = vmatprep.subr.bf16.mxu0 0
    %1203 = vmatpush2.bf16.msra.mxu0 0
    %1204 = vmatprep.mubr.bf16.mxu0 0
    %1205 = vmatmul.mubr.bf16.gmra.mxu0 %v1167
    %v1206 = vpop.f32.mrf.mxu0
    %v1207 = vadd.f32 0.0, %v1206
    %v1208 = vpop.f32.mrf.mxu0
    %v1209 = vpop.f32.mrf.mxu0
    %v1210 = vpop.f32.mrf.mxu0
    %1211 = vdwg.mxu0
    %v1213 = vsel %vm1066, %v1113, 0
    %v1216 = vsel %vm1122, %v1117, 0
    %1218 = vmatprep.subr.bf16.mxu0 0
    %1219 = vmatpush1.bf16.msra.mxu0 0
    %1220 = vmatprep.subr.bf16.mxu0 0
    %1221 = vmatpush1.bf16.msra.mxu0 0
    %1222 = vmatprep.subr.bf16.mxu0 0
    %1223 = vmatpush1.bf16.msra.mxu0 0
    %1224 = vmatprep.subr.bf16.mxu0 0
    %1225 = vmatpush1.bf16.msra.mxu0 0
    %1226 = vmatprep.subr.bf16.mxu0 0
    %1227 = vmatpush1.bf16.msra.mxu0 0
    %1228 = vmatprep.subr.bf16.mxu0 0
    %1229 = vmatpush1.bf16.msra.mxu0 0
    %1230 = vmatprep.subr.bf16.mxu0 0
    %1231 = vmatpush1.bf16.msra.mxu0 0
    %1232 = vmatprep.subr.bf16.mxu0 0
    %1233 = vmatpush1.bf16.msra.mxu0 %v1216
    %1234 = vmatprep.subr.bf16.mxu0 0
    %1235 = vmatpush2.bf16.msra.mxu0 0
    %1236 = vmatprep.subr.bf16.mxu0 0
    %1237 = vmatpush2.bf16.msra.mxu0 0
    %1238 = vmatprep.subr.bf16.mxu0 0
    %1239 = vmatpush2.bf16.msra.mxu0 0
    %1240 = vmatprep.subr.bf16.mxu0 0
    %1241 = vmatpush2.bf16.msra.mxu0 0
    %1242 = vmatprep.subr.bf16.mxu0 0
    %1243 = vmatpush2.bf16.msra.mxu0 0
    %1244 = vmatprep.subr.bf16.mxu0 0
    %1245 = vmatpush2.bf16.msra.mxu0 0
    %1246 = vmatprep.subr.bf16.mxu0 0
    %1247 = vmatpush2.bf16.msra.mxu0 0
    %1248 = vmatprep.subr.bf16.mxu0 0
    %1249 = vmatpush2.bf16.msra.mxu0 0
    %1250 = vmatprep.mubr.bf16.mxu0 0
    %1251 = vmatmul.mubr.bf16.gmra.mxu0 %v1213
    %v1252 = vpop.f32.mrf.mxu0
    %v1253 = vadd.f32 0.0, %v1252
    %v1254 = vpop.f32.mrf.mxu0
    %v1255 = vpop.f32.mrf.mxu0
    %v1256 = vpop.f32.mrf.mxu0
    %1257 = vdwg.mxu0
    %v1259 = vsel %vm1066, %v1114, 0
    %v1262 = vsel %vm1122, %v1118, 0
    %1264 = vmatprep.subr.bf16.mxu0 0
    %1265 = vmatpush1.bf16.msra.mxu0 0
    %1266 = vmatprep.subr.bf16.mxu0 0
    %1267 = vmatpush1.bf16.msra.mxu0 0
    %1268 = vmatprep.subr.bf16.mxu0 0
    %1269 = vmatpush1.bf16.msra.mxu0 0
    %1270 = vmatprep.subr.bf16.mxu0 0
    %1271 = vmatpush1.bf16.msra.mxu0 0
    %1272 = vmatprep.subr.bf16.mxu0 0
    %1273 = vmatpush1.bf16.msra.mxu0 0
    %1274 = vmatprep.subr.bf16.mxu0 0
    %1275 = vmatpush1.bf16.msra.mxu0 0
    %1276 = vmatprep.subr.bf16.mxu0 0
    %1277 = vmatpush1.bf16.msra.mxu0 0
    %1278 = vmatprep.subr.bf16.mxu0 0
    %1279 = vmatpush1.bf16.msra.mxu0 %v1262
    %1280 = vmatprep.subr.bf16.mxu0 0
    %1281 = vmatpush2.bf16.msra.mxu0 0
    %1282 = vmatprep.subr.bf16.mxu0 0
    %1283 = vmatpush2.bf16.msra.mxu0 0
    %1284 = vmatprep.subr.bf16.mxu0 0
    %1285 = vmatpush2.bf16.msra.mxu0 0
    %1286 = vmatprep.subr.bf16.mxu0 0
    %1287 = vmatpush2.bf16.msra.mxu0 0
    %1288 = vmatprep.subr.bf16.mxu0 0
    %1289 = vmatpush2.bf16.msra.mxu0 0
    %1290 = vmatprep.subr.bf16.mxu0 0
    %1291 = vmatpush2.bf16.msra.mxu0 0
    %1292 = vmatprep.subr.bf16.mxu0 0
    %1293 = vmatpush2.bf16.msra.mxu0 0
    %1294 = vmatprep.subr.bf16.mxu0 0
    %1295 = vmatpush2.bf16.msra.mxu0 0
    %1296 = vmatprep.mubr.bf16.mxu0 0
    %1297 = vmatmul.mubr.bf16.gmra.mxu0 %v1259
    %v1298 = vpop.f32.mrf.mxu0
    %v1299 = vadd.f32 0.0, %v1298
    %v1300 = vpop.f32.mrf.mxu0
    %v1301 = vpop.f32.mrf.mxu0
    %v1302 = vpop.f32.mrf.mxu0
    %1303 = vdwg.mxu0
    %1306 = vrot.lane.b32.xlu0 %v1253, 32
    %v1307 = vpop.permute.xlu0 %1306
    %1308 = vrot.lane.b32.xlu0 %v1299, 32
    %v1309 = vpop.permute.xlu0 %1308
    %v1312 = vsel %vm58, %v1161, %v1307
    %v1313 = vsel %vm58, %v1207, %v1309
    %v1314 = vld [vmem:[%s1 + $0x90] sm:$0xf]
    %v1315 = vld [vmem:[%s1 + $0x94] sm:$0xf]
    %v1316 = vld [vmem:[%s1 + $0x98] sm:$0xf]
    %v1317 = vld [vmem:[%s1 + $0x9c] sm:$0xf]
    %v1318 = vld [vmem:[%s1 + $0xa0] sm:$0xf]
    %v1319 = vld [vmem:[%s1 + $0xa4] sm:$0xf]
    %v1320 = vld [vmem:[%s1 + $0xa8] sm:$0xf]
    %v1321 = vld [vmem:[%s1 + $0xac] sm:$0xf]
    %v1322 = vpack.c.bf16 %v1313, %v1312
    %v1331 = vunpack.c.l.b16 %v1314
    %v1332 = vunpack.c.l.b16 %v1315
    %v1333 = vunpack.c.l.b16 %v1316
    %v1334 = vunpack.c.l.b16 %v1317
    %v1335 = vunpack.c.l.b16 %v1318
    %v1336 = vunpack.c.l.b16 %v1319
    %v1337 = vunpack.c.l.b16 %v1320
    %v1338 = vunpack.c.l.b16 %v1321
    %v1339 = vpack.c.b16 %v1332, %v1331
    %v1340 = vpack.c.b16 %v1334, %v1333
    %v1341 = vpack.c.b16 %v1336, %v1335
    %v1342 = vpack.c.b16 %v1338, %v1337
    %vm1347 = vcmask 523264
    %v1349 = vsel %vm1347, %v1322, 0
    %1351 = vmatprep.subr.bf16.mxu0 0
    %1352 = vmatpush1.bf16.msra.mxu0 0
    %1353 = vmatprep.subr.bf16.mxu0 0
    %1354 = vmatpush1.bf16.msra.mxu0 0
    %1355 = vmatprep.subr.bf16.mxu0 0
    %1356 = vmatpush1.bf16.msra.mxu0 0
    %1357 = vmatprep.subr.bf16.mxu0 0
    %1358 = vmatpush1.bf16.msra.mxu0 0
    %1359 = vmatprep.subr.bf16.mxu0 0
    %1360 = vmatpush1.bf16.msra.mxu0 %v1342
    %1361 = vmatprep.subr.bf16.mxu0 0
    %1362 = vmatpush1.bf16.msra.mxu0 %v1341
    %1363 = vmatprep.subr.bf16.mxu0 0
    %1364 = vmatpush1.bf16.msra.mxu0 %v1340
    %1365 = vmatprep.subr.bf16.mxu0 0
    %1366 = vmatpush1.bf16.msra.mxu0 %v1339
    %1367 = vmatprep.subr.bf16.mxu0 0
    %1368 = vmatpush2.bf16.msra.mxu0 0
    %1369 = vmatprep.subr.bf16.mxu0 0
    %1370 = vmatpush2.bf16.msra.mxu0 0
    %1371 = vmatprep.subr.bf16.mxu0 0
    %1372 = vmatpush2.bf16.msra.mxu0 0
    %1373 = vmatprep.subr.bf16.mxu0 0
    %1374 = vmatpush2.bf16.msra.mxu0 0
    %1375 = vmatprep.subr.bf16.mxu0 0
    %1376 = vmatpush2.bf16.msra.mxu0 0
    %1377 = vmatprep.subr.bf16.mxu0 0
    %1378 = vmatpush2.bf16.msra.mxu0 0
    %1379 = vmatprep.subr.bf16.mxu0 0
    %1380 = vmatpush2.bf16.msra.mxu0 0
    %1381 = vmatprep.subr.bf16.mxu0 0
    %1382 = vmatpush2.bf16.msra.mxu0 0
    %1383 = vmatprep.mubr.bf16.mxu0 0
    %1384 = vmatmul.mubr.bf16.gmra.mxu0 %v1349
    %v1385 = vpop.f32.mrf.mxu0
    %v1386 = vadd.f32 0.0, %v1385
    %v1387 = vpop.f32.mrf.mxu0
    %v1388 = vpop.f32.mrf.mxu0
    %v1389 = vadd.f32 0.0, %v1388
    %v1390 = vpop.f32.mrf.mxu0
    %1391 = vdwg.mxu0
    %v1392 = vadd.f32 %v753, %v1386
    %v1393 = vadd.f32 %v754, %v1389
    %v1394 = vsel %vm58, %v1392, 0.0
    %1395 = vadd.xlane.f32.xlu0 %v1394
    %v1396 = vpop.xlane.xlu0 %1395
    %v1397 = vsel %vm58, %v1393, 0.0
    %1398 = vadd.xlane.f32.xlu0 %v1397
    %v1399 = vpop.xlane.xlu0 %1398
    %v1400 = vrcp.pop 32.0
    %v1401 = vmul.f32 %v1396, %v1400
    %v1402 = vmul.f32 %v1399, %v1400
    %v1403 = vsub.f32 %v1392, %v1401
    %v1404 = vsub.f32 %v1393, %v1402
    %v1405 = vmul.f32 %v1403, %v1403
    %v1406 = vmul.f32 %v1404, %v1404
    %v1407 = vsel %vm58, %v1405, 0.0
    %1408 = vadd.xlane.f32.xlu0 %v1407
    %v1409 = vpop.xlane.xlu0 %1408
    %v1410 = vsel %vm58, %v1406, 0.0
    %1411 = vadd.xlane.f32.xlu0 %v1410
    %v1412 = vpop.xlane.xlu0 %1411
    %v1413 = vmul.f32 %v1409, %v1400
    %v1414 = vmul.f32 %v1412, %v1400
    %v1415 = vadd.f32 %v1413, 1e-06
    %v1416 = vadd.f32 %v1414, 1e-06
    %v1417 = vrsqrt.pop %v1415
    %v1418 = vrsqrt.pop %v1416
    %v1419 = vmul.f32 %v1403, %v1417
    %v1420 = vmul.f32 %v1404, %v1418
    %v1421 = vlaneseq
    %v1422 = vshrl.u32 %v1421, 7
    %v1423 = vsub.s32 5, %v1422
    %v1424 = vrot.slane %v22, %v1423
    %1426 = vrot.lane.b32.xlu0 %v1424, 64
    %v1427 = vpop.permute.xlu0 %1426
    %v1429 = vmul.f32 %v1419, %v1427
    %v1430 = vmul.f32 %v1420, %v1427
    %v1431 = vlaneseq
    %v1432 = vshrl.u32 %v1431, 7
    %v1433 = vsub.s32 6, %v1432
    %v1434 = vrot.slane %v22, %v1433
    %1436 = vrot.lane.b32.xlu0 %v1434, 64
    %v1437 = vpop.permute.xlu0 %1436
    %v1439 = vadd.f32 %v1429, %v1437
    %v1440 = vadd.f32 %v1430, %v1437
    %v1441 = vld [vmem:[%s2 + $0x20] sm:$0xf]
    %v1442 = vld [vmem:[%s2 + $0x28] sm:$0xf]
    %v1443 = vld [vmem:[%s2 + $0x30] sm:$0xf]
    %v1444 = vld [vmem:[%s2 + $0x38] sm:$0xf]
    %v1445 = vpack.c.bf16 %v1440, %v1439
    %v1450 = vunpack.c.l.b16 %v1441
    %v1451 = vunpack.c.l.b16 %v1442
    %v1452 = vunpack.c.l.b16 %v1443
    %v1453 = vunpack.c.l.b16 %v1444
    %v1454 = vpack.c.b16 %v1451, %v1450
    %v1455 = vpack.c.b16 %v1453, %v1452
    %v1459 = vsel %vm58, %v1445, 0
    %1461 = vmatprep.subr.bf16.mxu0 0
    %1462 = vmatpush1.bf16.msra.mxu0 0
    %1463 = vmatprep.subr.bf16.mxu0 0
    %1464 = vmatpush1.bf16.msra.mxu0 0
    %1465 = vmatprep.subr.bf16.mxu0 0
    %1466 = vmatpush1.bf16.msra.mxu0 0
    %1467 = vmatprep.subr.bf16.mxu0 0
    %1468 = vmatpush1.bf16.msra.mxu0 0
    %1469 = vmatprep.subr.bf16.mxu0 0
    %1470 = vmatpush1.bf16.msra.mxu0 0
    %1471 = vmatprep.subr.bf16.mxu0 0
    %1472 = vmatpush1.bf16.msra.mxu0 0
    %1473 = vmatprep.subr.bf16.mxu0 0
    %1474 = vmatpush1.bf16.msra.mxu0 %v1455
    %1475 = vmatprep.subr.bf16.mxu0 0
    %1476 = vmatpush1.bf16.msra.mxu0 %v1454
    %1477 = vmatprep.subr.bf16.mxu0 0
    %1478 = vmatpush2.bf16.msra.mxu0 0
    %1479 = vmatprep.subr.bf16.mxu0 0
    %1480 = vmatpush2.bf16.msra.mxu0 0
    %1481 = vmatprep.subr.bf16.mxu0 0
    %1482 = vmatpush2.bf16.msra.mxu0 0
    %1483 = vmatprep.subr.bf16.mxu0 0
    %1484 = vmatpush2.bf16.msra.mxu0 0
    %1485 = vmatprep.subr.bf16.mxu0 0
    %1486 = vmatpush2.bf16.msra.mxu0 0
    %1487 = vmatprep.subr.bf16.mxu0 0
    %1488 = vmatpush2.bf16.msra.mxu0 0
    %1489 = vmatprep.subr.bf16.mxu0 0
    %1490 = vmatpush2.bf16.msra.mxu0 0
    %1491 = vmatprep.subr.bf16.mxu0 0
    %1492 = vmatpush2.bf16.msra.mxu0 0
    %1493 = vmatprep.mubr.bf16.mxu0 0
    %1494 = vmatmul.mubr.bf16.gmra.mxu0 %v1459
    %v1495 = vpop.f32.mrf.mxu0
    %v1496 = vadd.f32 0.0, %v1495
    %v1497 = vpop.f32.mrf.mxu0
    %v1498 = vpop.f32.mrf.mxu0
    %v1499 = vadd.f32 0.0, %v1498
    %v1500 = vpop.f32.mrf.mxu0
    %1501 = vdwg.mxu0
    %1504 = vrot.lane.b32.xlu0 %v1496, 96
    %v1505 = vpop.permute.xlu0 %1504
    %1506 = vrot.lane.b32.xlu0 %v1499, 96
    %v1507 = vpop.permute.xlu0 %1506
    %1512 = vrot.lane.b32.xlu0 %v97, 96
    %v1513 = vpop.permute.xlu0 %1512
    %1514 = vrot.lane.b32.xlu0 %v100, 96
    %v1515 = vpop.permute.xlu0 %1514
    %v1518 = vpack.c.bf16 %v1496, %v1496
    %v1519 = vpack.c.bf16 %v1499, %v1499
    %v1520 = vpack.c.bf16 %v1505, %v1505
    %v1521 = vpack.c.bf16 %v1507, %v1507
    %v1522 = vpack.c.bf16 %v97, %v97
    %v1523 = vpack.c.bf16 %v100, %v100
    %v1524 = vpack.c.bf16 %v1513, %v1513
    %v1525 = vpack.c.bf16 %v1515, %v1515
    %v1527 = vsel %vm58, %v1518, 0
    %v1530 = vsel %vm58, %v1522, 0
    %1532 = vmatprep.subr.bf16.mxu0 0
    %1533 = vmatpush1.bf16.xpose.msra.mxu0 0
    %1534 = vmatprep.subr.bf16.mxu0 0
    %1535 = vmatpush1.bf16.xpose.msra.mxu0 0
    %1536 = vmatprep.subr.bf16.mxu0 0
    %1537 = vmatpush1.bf16.xpose.msra.mxu0 0
    %1538 = vmatprep.subr.bf16.mxu0 0
    %1539 = vmatpush1.bf16.xpose.msra.mxu0 0
    %1540 = vmatprep.subr.bf16.mxu0 0
    %1541 = vmatpush1.bf16.xpose.msra.mxu0 0
    %1542 = vmatprep.subr.bf16.mxu0 0
    %1543 = vmatpush1.bf16.xpose.msra.mxu0 0
    %1544 = vmatprep.subr.bf16.mxu0 0
    %1545 = vmatpush1.bf16.xpose.msra.mxu0 0
    %1546 = vmatprep.subr.bf16.mxu0 0
    %1547 = vmatpush1.bf16.xpose.msra.mxu0 %v1530
    %1548 = vmatprep.subr.bf16.mxu0 0
    %1549 = vmatpush2.bf16.xpose.msra.mxu0 0
    %1550 = vmatprep.subr.bf16.mxu0 0
    %1551 = vmatpush2.bf16.xpose.msra.mxu0 0
    %1552 = vmatprep.subr.bf16.mxu0 0
    %1553 = vmatpush2.bf16.xpose.msra.mxu0 0
    %1554 = vmatprep.subr.bf16.mxu0 0
    %1555 = vmatpush2.bf16.xpose.msra.mxu0 0
    %1556 = vmatprep.subr.bf16.mxu0 0
    %1557 = vmatpush2.bf16.xpose.msra.mxu0 0
    %1558 = vmatprep.subr.bf16.mxu0 0
    %1559 = vmatpush2.bf16.xpose.msra.mxu0 0
    %1560 = vmatprep.subr.bf16.mxu0 0
    %1561 = vmatpush2.bf16.xpose.msra.mxu0 0
    %1562 = vmatprep.subr.bf16.mxu0 0
    %1563 = vmatpush2.bf16.xpose.msra.mxu0 0
    %1564 = vmatprep.mubr.bf16.mxu0 0
    %1565 = vmatmul.mubr.bf16.gmra.mxu0 %v1527
    %v1566 = vpop.f32.mrf.mxu0
    %v1567 = vadd.f32 0.0, %v1566
    %v1568 = vpop.f32.mrf.mxu0
    %v1569 = vpop.f32.mrf.mxu0
    %v1570 = vpop.f32.mrf.mxu0
    %1571 = vdwg.mxu0
    %v1573 = vsel %vm58, %v1519, 0
    %v1576 = vsel %vm58, %v1523, 0
    %1578 = vmatprep.subr.bf16.mxu0 0
    %1579 = vmatpush1.bf16.xpose.msra.mxu0 0
    %1580 = vmatprep.subr.bf16.mxu0 0
    %1581 = vmatpush1.bf16.xpose.msra.mxu0 0
    %1582 = vmatprep.subr.bf16.mxu0 0
    %1583 = vmatpush1.bf16.xpose.msra.mxu0 0
    %1584 = vmatprep.subr.bf16.mxu0 0
    %1585 = vmatpush1.bf16.xpose.msra.mxu0 0
    %1586 = vmatprep.subr.bf16.mxu0 0
    %1587 = vmatpush1.bf16.xpose.msra.mxu0 0
    %1588 = vmatprep.subr.bf16.mxu0 0
    %1589 = vmatpush1.bf16.xpose.msra.mxu0 0
    %1590 = vmatprep.subr.bf16.mxu0 0
    %1591 = vmatpush1.bf16.xpose.msra.mxu0 0
    %1592 = vmatprep.subr.bf16.mxu0 0
    %1593 = vmatpush1.bf16.xpose.msra.mxu0 %v1576
    %1594 = vmatprep.subr.bf16.mxu0 0
    %1595 = vmatpush2.bf16.xpose.msra.mxu0 0
    %1596 = vmatprep.subr.bf16.mxu0 0
    %1597 = vmatpush2.bf16.xpose.msra.mxu0 0
    %1598 = vmatprep.subr.bf16.mxu0 0
    %1599 = vmatpush2.bf16.xpose.msra.mxu0 0
    %1600 = vmatprep.subr.bf16.mxu0 0
    %1601 = vmatpush2.bf16.xpose.msra.mxu0 0
    %1602 = vmatprep.subr.bf16.mxu0 0
    %1603 = vmatpush2.bf16.xpose.msra.mxu0 0
    %1604 = vmatprep.subr.bf16.mxu0 0
    %1605 = vmatpush2.bf16.xpose.msra.mxu0 0
    %1606 = vmatprep.subr.bf16.mxu0 0
    %1607 = vmatpush2.bf16.xpose.msra.mxu0 0
    %1608 = vmatprep.subr.bf16.mxu0 0
    %1609 = vmatpush2.bf16.xpose.msra.mxu0 0
    %1610 = vmatprep.mubr.bf16.mxu0 0
    %1611 = vmatmul.mubr.bf16.gmra.mxu0 %v1573
    %v1612 = vpop.f32.mrf.mxu0
    %v1613 = vadd.f32 0.0, %v1612
    %v1614 = vpop.f32.mrf.mxu0
    %v1615 = vpop.f32.mrf.mxu0
    %v1616 = vpop.f32.mrf.mxu0
    %1617 = vdwg.mxu0
    %v1619 = vsel %vm58, %v1520, 0
    %v1622 = vsel %vm58, %v1524, 0
    %1624 = vmatprep.subr.bf16.mxu0 0
    %1625 = vmatpush1.bf16.xpose.msra.mxu0 0
    %1626 = vmatprep.subr.bf16.mxu0 0
    %1627 = vmatpush1.bf16.xpose.msra.mxu0 0
    %1628 = vmatprep.subr.bf16.mxu0 0
    %1629 = vmatpush1.bf16.xpose.msra.mxu0 0
    %1630 = vmatprep.subr.bf16.mxu0 0
    %1631 = vmatpush1.bf16.xpose.msra.mxu0 0
    %1632 = vmatprep.subr.bf16.mxu0 0
    %1633 = vmatpush1.bf16.xpose.msra.mxu0 0
    %1634 = vmatprep.subr.bf16.mxu0 0
    %1635 = vmatpush1.bf16.xpose.msra.mxu0 0
    %1636 = vmatprep.subr.bf16.mxu0 0
    %1637 = vmatpush1.bf16.xpose.msra.mxu0 0
    %1638 = vmatprep.subr.bf16.mxu0 0
    %1639 = vmatpush1.bf16.xpose.msra.mxu0 %v1622
    %1640 = vmatprep.subr.bf16.mxu0 0
    %1641 = vmatpush2.bf16.xpose.msra.mxu0 0
    %1642 = vmatprep.subr.bf16.mxu0 0
    %1643 = vmatpush2.bf16.xpose.msra.mxu0 0
    %1644 = vmatprep.subr.bf16.mxu0 0
    %1645 = vmatpush2.bf16.xpose.msra.mxu0 0
    %1646 = vmatprep.subr.bf16.mxu0 0
    %1647 = vmatpush2.bf16.xpose.msra.mxu0 0
    %1648 = vmatprep.subr.bf16.mxu0 0
    %1649 = vmatpush2.bf16.xpose.msra.mxu0 0
    %1650 = vmatprep.subr.bf16.mxu0 0
    %1651 = vmatpush2.bf16.xpose.msra.mxu0 0
    %1652 = vmatprep.subr.bf16.mxu0 0
    %1653 = vmatpush2.bf16.xpose.msra.mxu0 0
    %1654 = vmatprep.subr.bf16.mxu0 0
    %1655 = vmatpush2.bf16.xpose.msra.mxu0 0
    %1656 = vmatprep.mubr.bf16.mxu0 0
    %1657 = vmatmul.mubr.bf16.gmra.mxu0 %v1619
    %v1658 = vpop.f32.mrf.mxu0
    %v1659 = vadd.f32 0.0, %v1658
    %v1660 = vpop.f32.mrf.mxu0
    %v1661 = vpop.f32.mrf.mxu0
    %v1662 = vpop.f32.mrf.mxu0
    %1663 = vdwg.mxu0
    %v1665 = vsel %vm58, %v1521, 0
    %v1668 = vsel %vm58, %v1525, 0
    %1670 = vmatprep.subr.bf16.mxu0 0
    %1671 = vmatpush1.bf16.xpose.msra.mxu0 0
    %1672 = vmatprep.subr.bf16.mxu0 0
    %1673 = vmatpush1.bf16.xpose.msra.mxu0 0
    %1674 = vmatprep.subr.bf16.mxu0 0
    %1675 = vmatpush1.bf16.xpose.msra.mxu0 0
    %1676 = vmatprep.subr.bf16.mxu0 0
    %1677 = vmatpush1.bf16.xpose.msra.mxu0 0
    %1678 = vmatprep.subr.bf16.mxu0 0
    %1679 = vmatpush1.bf16.xpose.msra.mxu0 0
    %1680 = vmatprep.subr.bf16.mxu0 0
    %1681 = vmatpush1.bf16.xpose.msra.mxu0 0
    %1682 = vmatprep.subr.bf16.mxu0 0
    %1683 = vmatpush1.bf16.xpose.msra.mxu0 0
    %1684 = vmatprep.subr.bf16.mxu0 0
    %1685 = vmatpush1.bf16.xpose.msra.mxu0 %v1668
    %1686 = vmatprep.subr.bf16.mxu0 0
    %1687 = vmatpush2.bf16.xpose.msra.mxu0 0
    %1688 = vmatprep.subr.bf16.mxu0 0
    %1689 = vmatpush2.bf16.xpose.msra.mxu0 0
    %1690 = vmatprep.subr.bf16.mxu0 0
    %1691 = vmatpush2.bf16.xpose.msra.mxu0 0
    %1692 = vmatprep.subr.bf16.mxu0 0
    %1693 = vmatpush2.bf16.xpose.msra.mxu0 0
    %1694 = vmatprep.subr.bf16.mxu0 0
    %1695 = vmatpush2.bf16.xpose.msra.mxu0 0
    %1696 = vmatprep.subr.bf16.mxu0 0
    %1697 = vmatpush2.bf16.xpose.msra.mxu0 0
    %1698 = vmatprep.subr.bf16.mxu0 0
    %1699 = vmatpush2.bf16.xpose.msra.mxu0 0
    %1700 = vmatprep.subr.bf16.mxu0 0
    %1701 = vmatpush2.bf16.xpose.msra.mxu0 0
    %1702 = vmatprep.mubr.bf16.mxu0 0
    %1703 = vmatmul.mubr.bf16.gmra.mxu0 %v1665
    %v1704 = vpop.f32.mrf.mxu0
    %v1705 = vadd.f32 0.0, %v1704
    %v1706 = vpop.f32.mrf.mxu0
    %v1707 = vpop.f32.mrf.mxu0
    %v1708 = vpop.f32.mrf.mxu0
    %1709 = vdwg.mxu0
    %v1710 = vmul.f32 %v1567, 0.17677669
    %v1711 = vmul.f32 %v1613, 0.17677669
    %v1712 = vmul.f32 %v1659, 0.17677669
    %v1713 = vmul.f32 %v1705, 0.17677669
    %v1714 = vsel %vm1066, %v1710, -inf
    %1715 = vmax.xlane.f32.xlu0 %v1714
    %v1716 = vpop.xlane.xlu0 %1715
    %v1717 = vsel %vm1066, %v1711, -inf
    %1718 = vmax.xlane.f32.xlu0 %v1717
    %v1719 = vpop.xlane.xlu0 %1718
    %v1720 = vsel %vm1066, %v1712, -inf
    %1721 = vmax.xlane.f32.xlu0 %v1720
    %v1722 = vpop.xlane.xlu0 %1721
    %v1723 = vsel %vm1066, %v1713, -inf
    %1724 = vmax.xlane.f32.xlu0 %v1723
    %v1725 = vpop.xlane.xlu0 %1724
    %v1726 = vsub.f32 %v1710, %v1716
    %v1727 = vsub.f32 %v1711, %v1719
    %v1728 = vsub.f32 %v1712, %v1722
    %v1729 = vsub.f32 %v1713, %v1725
    %v1730 = vmul.f32 %v1726, 1.442695
    %v1731 = vpow.pop %v1730
    %v1732 = vmul.f32 %v1727, 1.442695
    %v1733 = vpow.pop %v1732
    %v1734 = vmul.f32 %v1728, 1.442695
    %v1735 = vpow.pop %v1734
    %v1736 = vmul.f32 %v1729, 1.442695
    %v1737 = vpow.pop %v1736
    %v1738 = vsel %vm1066, %v1731, 0.0
    %1739 = vadd.xlane.f32.xlu0 %v1738
    %v1740 = vpop.xlane.xlu0 %1739
    %v1741 = vsel %vm1066, %v1733, 0.0
    %1742 = vadd.xlane.f32.xlu0 %v1741
    %v1743 = vpop.xlane.xlu0 %1742
    %v1744 = vsel %vm1066, %v1735, 0.0
    %1745 = vadd.xlane.f32.xlu0 %v1744
    %v1746 = vpop.xlane.xlu0 %1745
    %v1747 = vsel %vm1066, %v1737, 0.0
    %1748 = vadd.xlane.f32.xlu0 %v1747
    %v1749 = vpop.xlane.xlu0 %1748
    %v1750 = vrcp.pop %v1740
    %v1751 = vrcp.pop %v1743
    %v1752 = vrcp.pop %v1746
    %v1753 = vrcp.pop %v1749
    %v1754 = vmul.f32 %v1731, %v1750
    %v1755 = vmul.f32 %v1733, %v1751
    %v1756 = vmul.f32 %v1735, %v1752
    %v1757 = vmul.f32 %v1737, %v1753
    %v1758 = vpack.c.bf16 %v1754, %v1754
    %v1759 = vpack.c.bf16 %v1755, %v1755
    %v1760 = vpack.c.bf16 %v1756, %v1756
    %v1761 = vpack.c.bf16 %v1757, %v1757
    %1763 = vrot.lane.b32.xlu0 %v1522, 64
    %v1764 = vpop.permute.xlu0 %1763
    %v1766 = vsel %vm1066, %v1758, 0
    %v1769 = vsel %vm1122, %v1764, 0
    %1771 = vmatprep.subr.bf16.mxu0 0
    %1772 = vmatpush1.bf16.msra.mxu0 0
    %1773 = vmatprep.subr.bf16.mxu0 0
    %1774 = vmatpush1.bf16.msra.mxu0 0
    %1775 = vmatprep.subr.bf16.mxu0 0
    %1776 = vmatpush1.bf16.msra.mxu0 0
    %1777 = vmatprep.subr.bf16.mxu0 0
    %1778 = vmatpush1.bf16.msra.mxu0 0
    %1779 = vmatprep.subr.bf16.mxu0 0
    %1780 = vmatpush1.bf16.msra.mxu0 0
    %1781 = vmatprep.subr.bf16.mxu0 0
    %1782 = vmatpush1.bf16.msra.mxu0 0
    %1783 = vmatprep.subr.bf16.mxu0 0
    %1784 = vmatpush1.bf16.msra.mxu0 0
    %1785 = vmatprep.subr.bf16.mxu0 0
    %1786 = vmatpush1.bf16.msra.mxu0 %v1769
    %1787 = vmatprep.subr.bf16.mxu0 0
    %1788 = vmatpush2.bf16.msra.mxu0 0
    %1789 = vmatprep.subr.bf16.mxu0 0
    %1790 = vmatpush2.bf16.msra.mxu0 0
    %1791 = vmatprep.subr.bf16.mxu0 0
    %1792 = vmatpush2.bf16.msra.mxu0 0
    %1793 = vmatprep.subr.bf16.mxu0 0
    %1794 = vmatpush2.bf16.msra.mxu0 0
    %1795 = vmatprep.subr.bf16.mxu0 0
    %1796 = vmatpush2.bf16.msra.mxu0 0
    %1797 = vmatprep.subr.bf16.mxu0 0
    %1798 = vmatpush2.bf16.msra.mxu0 0
    %1799 = vmatprep.subr.bf16.mxu0 0
    %1800 = vmatpush2.bf16.msra.mxu0 0
    %1801 = vmatprep.subr.bf16.mxu0 0
    %1802 = vmatpush2.bf16.msra.mxu0 0
    %1803 = vmatprep.mubr.bf16.mxu0 0
    %1804 = vmatmul.mubr.bf16.gmra.mxu0 %v1766
    %v1805 = vpop.f32.mrf.mxu0
    %v1806 = vadd.f32 0.0, %v1805
    %v1807 = vpop.f32.mrf.mxu0
    %v1808 = vpop.f32.mrf.mxu0
    %v1809 = vpop.f32.mrf.mxu0
    %1810 = vdwg.mxu0
    %1812 = vrot.lane.b32.xlu0 %v1523, 64
    %v1813 = vpop.permute.xlu0 %1812
    %v1815 = vsel %vm1066, %v1759, 0
    %v1818 = vsel %vm1122, %v1813, 0
    %1820 = vmatprep.subr.bf16.mxu0 0
    %1821 = vmatpush1.bf16.msra.mxu0 0
    %1822 = vmatprep.subr.bf16.mxu0 0
    %1823 = vmatpush1.bf16.msra.mxu0 0
    %1824 = vmatprep.subr.bf16.mxu0 0
    %1825 = vmatpush1.bf16.msra.mxu0 0
    %1826 = vmatprep.subr.bf16.mxu0 0
    %1827 = vmatpush1.bf16.msra.mxu0 0
    %1828 = vmatprep.subr.bf16.mxu0 0
    %1829 = vmatpush1.bf16.msra.mxu0 0
    %1830 = vmatprep.subr.bf16.mxu0 0
    %1831 = vmatpush1.bf16.msra.mxu0 0
    %1832 = vmatprep.subr.bf16.mxu0 0
    %1833 = vmatpush1.bf16.msra.mxu0 0
    %1834 = vmatprep.subr.bf16.mxu0 0
    %1835 = vmatpush1.bf16.msra.mxu0 %v1818
    %1836 = vmatprep.subr.bf16.mxu0 0
    %1837 = vmatpush2.bf16.msra.mxu0 0
    %1838 = vmatprep.subr.bf16.mxu0 0
    %1839 = vmatpush2.bf16.msra.mxu0 0
    %1840 = vmatprep.subr.bf16.mxu0 0
    %1841 = vmatpush2.bf16.msra.mxu0 0
    %1842 = vmatprep.subr.bf16.mxu0 0
    %1843 = vmatpush2.bf16.msra.mxu0 0
    %1844 = vmatprep.subr.bf16.mxu0 0
    %1845 = vmatpush2.bf16.msra.mxu0 0
    %1846 = vmatprep.subr.bf16.mxu0 0
    %1847 = vmatpush2.bf16.msra.mxu0 0
    %1848 = vmatprep.subr.bf16.mxu0 0
    %1849 = vmatpush2.bf16.msra.mxu0 0
    %1850 = vmatprep.subr.bf16.mxu0 0
    %1851 = vmatpush2.bf16.msra.mxu0 0
    %1852 = vmatprep.mubr.bf16.mxu0 0
    %1853 = vmatmul.mubr.bf16.gmra.mxu0 %v1815
    %v1854 = vpop.f32.mrf.mxu0
    %v1855 = vadd.f32 0.0, %v1854
    %v1856 = vpop.f32.mrf.mxu0
    %v1857 = vpop.f32.mrf.mxu0
    %v1858 = vpop.f32.mrf.mxu0
    %1859 = vdwg.mxu0
    %1861 = vrot.lane.b32.xlu0 %v1524, 64
    %v1862 = vpop.permute.xlu0 %1861
    %v1864 = vsel %vm1066, %v1760, 0
    %v1867 = vsel %vm1122, %v1862, 0
    %1869 = vmatprep.subr.bf16.mxu0 0
    %1870 = vmatpush1.bf16.msra.mxu0 0
    %1871 = vmatprep.subr.bf16.mxu0 0
    %1872 = vmatpush1.bf16.msra.mxu0 0
    %1873 = vmatprep.subr.bf16.mxu0 0
    %1874 = vmatpush1.bf16.msra.mxu0 0
    %1875 = vmatprep.subr.bf16.mxu0 0
    %1876 = vmatpush1.bf16.msra.mxu0 0
    %1877 = vmatprep.subr.bf16.mxu0 0
    %1878 = vmatpush1.bf16.msra.mxu0 0
    %1879 = vmatprep.subr.bf16.mxu0 0
    %1880 = vmatpush1.bf16.msra.mxu0 0
    %1881 = vmatprep.subr.bf16.mxu0 0
    %1882 = vmatpush1.bf16.msra.mxu0 0
    %1883 = vmatprep.subr.bf16.mxu0 0
    %1884 = vmatpush1.bf16.msra.mxu0 %v1867
    %1885 = vmatprep.subr.bf16.mxu0 0
    %1886 = vmatpush2.bf16.msra.mxu0 0
    %1887 = vmatprep.subr.bf16.mxu0 0
    %1888 = vmatpush2.bf16.msra.mxu0 0
    %1889 = vmatprep.subr.bf16.mxu0 0
    %1890 = vmatpush2.bf16.msra.mxu0 0
    %1891 = vmatprep.subr.bf16.mxu0 0
    %1892 = vmatpush2.bf16.msra.mxu0 0
    %1893 = vmatprep.subr.bf16.mxu0 0
    %1894 = vmatpush2.bf16.msra.mxu0 0
    %1895 = vmatprep.subr.bf16.mxu0 0
    %1896 = vmatpush2.bf16.msra.mxu0 0
    %1897 = vmatprep.subr.bf16.mxu0 0
    %1898 = vmatpush2.bf16.msra.mxu0 0
    %1899 = vmatprep.subr.bf16.mxu0 0
    %1900 = vmatpush2.bf16.msra.mxu0 0
    %1901 = vmatprep.mubr.bf16.mxu0 0
    %1902 = vmatmul.mubr.bf16.gmra.mxu0 %v1864
    %v1903 = vpop.f32.mrf.mxu0
    %v1904 = vadd.f32 0.0, %v1903
    %v1905 = vpop.f32.mrf.mxu0
    %v1906 = vpop.f32.mrf.mxu0
    %v1907 = vpop.f32.mrf.mxu0
    %1908 = vdwg.mxu0
    %1910 = vrot.lane.b32.xlu0 %v1525, 64
    %v1911 = vpop.permute.xlu0 %1910
    %v1913 = vsel %vm1066, %v1761, 0
    %v1916 = vsel %vm1122, %v1911, 0
    %1918 = vmatprep.subr.bf16.mxu0 0
    %1919 = vmatpush1.bf16.msra.mxu0 0
    %1920 = vmatprep.subr.bf16.mxu0 0
    %1921 = vmatpush1.bf16.msra.mxu0 0
    %1922 = vmatprep.subr.bf16.mxu0 0
    %1923 = vmatpush1.bf16.msra.mxu0 0
    %1924 = vmatprep.subr.bf16.mxu0 0
    %1925 = vmatpush1.bf16.msra.mxu0 0
    %1926 = vmatprep.subr.bf16.mxu0 0
    %1927 = vmatpush1.bf16.msra.mxu0 0
    %1928 = vmatprep.subr.bf16.mxu0 0
    %1929 = vmatpush1.bf16.msra.mxu0 0
    %1930 = vmatprep.subr.bf16.mxu0 0
    %1931 = vmatpush1.bf16.msra.mxu0 0
    %1932 = vmatprep.subr.bf16.mxu0 0
    %1933 = vmatpush1.bf16.msra.mxu0 %v1916
    %1934 = vmatprep.subr.bf16.mxu0 0
    %1935 = vmatpush2.bf16.msra.mxu0 0
    %1936 = vmatprep.subr.bf16.mxu0 0
    %1937 = vmatpush2.bf16.msra.mxu0 0
    %1938 = vmatprep.subr.bf16.mxu0 0
    %1939 = vmatpush2.bf16.msra.mxu0 0
    %1940 = vmatprep.subr.bf16.mxu0 0
    %1941 = vmatpush2.bf16.msra.mxu0 0
    %1942 = vmatprep.subr.bf16.mxu0 0
    %1943 = vmatpush2.bf16.msra.mxu0 0
    %1944 = vmatprep.subr.bf16.mxu0 0
    %1945 = vmatpush2.bf16.msra.mxu0 0
    %1946 = vmatprep.subr.bf16.mxu0 0
    %1947 = vmatpush2.bf16.msra.mxu0 0
    %1948 = vmatprep.subr.bf16.mxu0 0
    %1949 = vmatpush2.bf16.msra.mxu0 0
    %1950 = vmatprep.mubr.bf16.mxu0 0
    %1951 = vmatmul.mubr.bf16.gmra.mxu0 %v1913
    %v1952 = vpop.f32.mrf.mxu0
    %v1953 = vadd.f32 0.0, %v1952
    %v1954 = vpop.f32.mrf.mxu0
    %v1955 = vpop.f32.mrf.mxu0
    %v1956 = vpop.f32.mrf.mxu0
    %1957 = vdwg.mxu0
    %1960 = vrot.lane.b32.xlu0 %v1904, 32
    %v1961 = vpop.permute.xlu0 %1960
    %1962 = vrot.lane.b32.xlu0 %v1953, 32
    %v1963 = vpop.permute.xlu0 %1962
    %v1966 = vsel %vm58, %v1806, %v1961
    %v1967 = vsel %vm58, %v1855, %v1963
    %v1968 = vld [vmem:[%s1 + $0xb0] sm:$0xf]
    %v1969 = vld [vmem:[%s1 + $0xb4] sm:$0xf]
    %v1970 = vld [vmem:[%s1 + $0xb8] sm:$0xf]
    %v1971 = vld [vmem:[%s1 + $0xbc] sm:$0xf]
    %v1972 = vld [vmem:[%s1 + $0xc0] sm:$0xf]
    %v1973 = vld [vmem:[%s1 + $0xc4] sm:$0xf]
    %v1974 = vld [vmem:[%s1 + $0xc8] sm:$0xf]
    %v1975 = vld [vmem:[%s1 + $0xcc] sm:$0xf]
    %v1976 = vpack.c.bf16 %v1967, %v1966
    %v1985 = vunpack.c.l.b16 %v1968
    %v1986 = vunpack.c.l.b16 %v1969
    %v1987 = vunpack.c.l.b16 %v1970
    %v1988 = vunpack.c.l.b16 %v1971
    %v1989 = vunpack.c.l.b16 %v1972
    %v1990 = vunpack.c.l.b16 %v1973
    %v1991 = vunpack.c.l.b16 %v1974
    %v1992 = vunpack.c.l.b16 %v1975
    %v1993 = vpack.c.b16 %v1986, %v1985
    %v1994 = vpack.c.b16 %v1988, %v1987
    %v1995 = vpack.c.b16 %v1990, %v1989
    %v1996 = vpack.c.b16 %v1992, %v1991
    %v2002 = vsel %vm1347, %v1976, 0
    %2004 = vmatprep.subr.bf16.mxu0 0
    %2005 = vmatpush1.bf16.msra.mxu0 0
    %2006 = vmatprep.subr.bf16.mxu0 0
    %2007 = vmatpush1.bf16.msra.mxu0 0
    %2008 = vmatprep.subr.bf16.mxu0 0
    %2009 = vmatpush1.bf16.msra.mxu0 0
    %2010 = vmatprep.subr.bf16.mxu0 0
    %2011 = vmatpush1.bf16.msra.mxu0 0
    %2012 = vmatprep.subr.bf16.mxu0 0
    %2013 = vmatpush1.bf16.msra.mxu0 %v1996
    %2014 = vmatprep.subr.bf16.mxu0 0
    %2015 = vmatpush1.bf16.msra.mxu0 %v1995
    %2016 = vmatprep.subr.bf16.mxu0 0
    %2017 = vmatpush1.bf16.msra.mxu0 %v1994
    %2018 = vmatprep.subr.bf16.mxu0 0
    %2019 = vmatpush1.bf16.msra.mxu0 %v1993
    %2020 = vmatprep.subr.bf16.mxu0 0
    %2021 = vmatpush2.bf16.msra.mxu0 0
    %2022 = vmatprep.subr.bf16.mxu0 0
    %2023 = vmatpush2.bf16.msra.mxu0 0
    %2024 = vmatprep.subr.bf16.mxu0 0
    %2025 = vmatpush2.bf16.msra.mxu0 0
    %2026 = vmatprep.subr.bf16.mxu0 0
    %2027 = vmatpush2.bf16.msra.mxu0 0
    %2028 = vmatprep.subr.bf16.mxu0 0
    %2029 = vmatpush2.bf16.msra.mxu0 0
    %2030 = vmatprep.subr.bf16.mxu0 0
    %2031 = vmatpush2.bf16.msra.mxu0 0
    %2032 = vmatprep.subr.bf16.mxu0 0
    %2033 = vmatpush2.bf16.msra.mxu0 0
    %2034 = vmatprep.subr.bf16.mxu0 0
    %2035 = vmatpush2.bf16.msra.mxu0 0
    %2036 = vmatprep.mubr.bf16.mxu0 0
    %2037 = vmatmul.mubr.bf16.gmra.mxu0 %v2002
    %v2038 = vpop.f32.mrf.mxu0
    %v2039 = vadd.f32 0.0, %v2038
    %v2040 = vpop.f32.mrf.mxu0
    %v2041 = vpop.f32.mrf.mxu0
    %v2042 = vadd.f32 0.0, %v2041
    %v2043 = vpop.f32.mrf.mxu0
    %2044 = vdwg.mxu0
    %v2045 = vadd.f32 %v1439, %v2039
    %v2046 = vadd.f32 %v1440, %v2042
    %v2047 = vsel %vm58, %v2045, 0.0
    %2048 = vadd.xlane.f32.xlu0 %v2047
    %v2049 = vpop.xlane.xlu0 %2048
    %v2050 = vsel %vm58, %v2046, 0.0
    %2051 = vadd.xlane.f32.xlu0 %v2050
    %v2052 = vpop.xlane.xlu0 %2051
    %v2053 = vmul.f32 %v2049, %v1400
    %v2054 = vmul.f32 %v2052, %v1400
    %v2055 = vsub.f32 %v2045, %v2053
    %v2056 = vsub.f32 %v2046, %v2054
    %v2057 = vmul.f32 %v2055, %v2055
    %v2058 = vmul.f32 %v2056, %v2056
    %v2059 = vsel %vm58, %v2057, 0.0
    %2060 = vadd.xlane.f32.xlu0 %v2059
    %v2061 = vpop.xlane.xlu0 %2060
    %v2062 = vsel %vm58, %v2058, 0.0
    %2063 = vadd.xlane.f32.xlu0 %v2062
    %v2064 = vpop.xlane.xlu0 %2063
    %v2065 = vmul.f32 %v2061, %v1400
    %v2066 = vmul.f32 %v2064, %v1400
    %v2067 = vadd.f32 %v2065, 1e-06
    %v2068 = vadd.f32 %v2066, 1e-06
    %v2069 = vrsqrt.pop %v2067
    %v2070 = vrsqrt.pop %v2068
    %v2071 = vmul.f32 %v2055, %v2069
    %v2072 = vmul.f32 %v2056, %v2070
    %v2073 = vlaneseq
    %v2074 = vshrl.u32 %v2073, 7
    %v2075 = vsub.s32 7, %v2074
    %v2076 = vrot.slane %v22, %v2075
    %2078 = vrot.lane.b32.xlu0 %v2076, 64
    %v2079 = vpop.permute.xlu0 %2078
    %v2081 = vmul.f32 %v2071, %v2079
    %v2082 = vmul.f32 %v2072, %v2079
    %v2083 = vlaneseq
    %v2084 = vshrl.u32 %v2083, 7
    %v2085 = vsub.s32 0, %v2084
    %v2086 = vrot.slane %v23, %v2085
    %2088 = vrot.lane.b32.xlu0 %v2086, 64
    %v2089 = vpop.permute.xlu0 %2088
    %v2091 = vadd.f32 %v2081, %v2089
    %v2092 = vadd.f32 %v2082, %v2089
    %v2093 = vld [vmem:[%s2 + $0x40] sm:$0xf]
    %v2094 = vld [vmem:[%s2 + $0x48] sm:$0xf]
    %v2095 = vld [vmem:[%s2 + $0x50] sm:$0xf]
    %v2096 = vld [vmem:[%s2 + $0x58] sm:$0xf]
    %v2097 = vpack.c.bf16 %v2092, %v2091
    %v2098 = vlaneseq
    %v2099 = vshrl.u32 %v2098, 7
    %v2100 = vsub.s32 1, %v2099
    %v2101 = vrot.slane %v23, %v2100
    %v2106 = vunpack.c.l.b16 %v2093
    %v2107 = vunpack.c.l.b16 %v2094
    %v2108 = vunpack.c.l.b16 %v2095
    %v2109 = vunpack.c.l.b16 %v2096
    %v2110 = vpack.c.b16 %v2107, %v2106
    %v2111 = vpack.c.b16 %v2109, %v2108
    %2115 = vrot.lane.b32.xlu0 %v2101, 64
    %v2116 = vpop.permute.xlu0 %2115
    %v2119 = vsel %vm58, %v2097, 0
    %2121 = vmatprep.subr.bf16.mxu0 0
    %2122 = vmatpush1.bf16.msra.mxu0 0
    %2123 = vmatprep.subr.bf16.mxu0 0
    %2124 = vmatpush1.bf16.msra.mxu0 0
    %2125 = vmatprep.subr.bf16.mxu0 0
    %2126 = vmatpush1.bf16.msra.mxu0 0
    %2127 = vmatprep.subr.bf16.mxu0 0
    %2128 = vmatpush1.bf16.msra.mxu0 0
    %2129 = vmatprep.subr.bf16.mxu0 0
    %2130 = vmatpush1.bf16.msra.mxu0 0
    %2131 = vmatprep.subr.bf16.mxu0 0
    %2132 = vmatpush1.bf16.msra.mxu0 0
    %2133 = vmatprep.subr.bf16.mxu0 0
    %2134 = vmatpush1.bf16.msra.mxu0 %v2111
    %2135 = vmatprep.subr.bf16.mxu0 0
    %2136 = vmatpush1.bf16.msra.mxu0 %v2110
    %2137 = vmatprep.subr.bf16.mxu0 0
    %2138 = vmatpush2.bf16.msra.mxu0 0
    %2139 = vmatprep.subr.bf16.mxu0 0
    %2140 = vmatpush2.bf16.msra.mxu0 0
    %2141 = vmatprep.subr.bf16.mxu0 0
    %2142 = vmatpush2.bf16.msra.mxu0 0
    %2143 = vmatprep.subr.bf16.mxu0 0
    %2144 = vmatpush2.bf16.msra.mxu0 0
    %2145 = vmatprep.subr.bf16.mxu0 0
    %2146 = vmatpush2.bf16.msra.mxu0 0
    %2147 = vmatprep.subr.bf16.mxu0 0
    %2148 = vmatpush2.bf16.msra.mxu0 0
    %2149 = vmatprep.subr.bf16.mxu0 0
    %2150 = vmatpush2.bf16.msra.mxu0 0
    %2151 = vmatprep.subr.bf16.mxu0 0
    %2152 = vmatpush2.bf16.msra.mxu0 0
    %2153 = vmatprep.mubr.bf16.mxu0 0
    %2154 = vmatmul.mubr.bf16.gmra.mxu0 %v2119
    %v2155 = vpop.f32.mrf.mxu0
    %v2156 = vadd.f32 %v2116, %v2155
    %v2157 = vpop.f32.mrf.mxu0
    %v2158 = vpop.f32.mrf.mxu0
    %v2159 = vadd.f32 %v2116, %v2158
    %v2160 = vpop.f32.mrf.mxu0
    %2161 = vdwg.mxu0
    %v2162 = vmax.f32 %v2156, 0.0
    %v2163 = vmax.f32 %v2159, 0.0
    %v2164 = vld [vmem:[%s1 + $0xd0] sm:$0xf]
    %v2165 = vld [vmem:[%s1 + $0xd4] sm:$0xf]
    %v2166 = vld [vmem:[%s1 + $0xd8] sm:$0xf]
    %v2167 = vld [vmem:[%s1 + $0xdc] sm:$0xf]
    %v2168 = vld [vmem:[%s1 + $0xe0] sm:$0xf]
    %v2169 = vld [vmem:[%s1 + $0xe4] sm:$0xf]
    %v2170 = vld [vmem:[%s1 + $0xe8] sm:$0xf]
    %v2171 = vld [vmem:[%s1 + $0xec] sm:$0xf]
    %v2172 = vpack.c.bf16 %v2163, %v2162
    %v2173 = vlaneseq
    %v2174 = vshrl.u32 %v2173, 7
    %v2175 = vsub.s32 2, %v2174
    %v2176 = vrot.slane %v23, %v2175
    %v2185 = vunpack.c.l.b16 %v2164
    %v2186 = vunpack.c.l.b16 %v2165
    %v2187 = vunpack.c.l.b16 %v2166
    %v2188 = vunpack.c.l.b16 %v2167
    %v2189 = vunpack.c.l.b16 %v2168
    %v2190 = vunpack.c.l.b16 %v2169
    %v2191 = vunpack.c.l.b16 %v2170
    %v2192 = vunpack.c.l.b16 %v2171
    %v2193 = vpack.c.b16 %v2186, %v2185
    %v2194 = vpack.c.b16 %v2188, %v2187
    %v2195 = vpack.c.b16 %v2190, %v2189
    %v2196 = vpack.c.b16 %v2192, %v2191
    %2202 = vrot.lane.b32.xlu0 %v2176, 64
    %v2203 = vpop.permute.xlu0 %2202
    %v2206 = vsel %vm1347, %v2172, 0
    %2208 = vmatprep.subr.bf16.mxu0 0
    %2209 = vmatpush1.bf16.msra.mxu0 0
    %2210 = vmatprep.subr.bf16.mxu0 0
    %2211 = vmatpush1.bf16.msra.mxu0 0
    %2212 = vmatprep.subr.bf16.mxu0 0
    %2213 = vmatpush1.bf16.msra.mxu0 0
    %2214 = vmatprep.subr.bf16.mxu0 0
    %2215 = vmatpush1.bf16.msra.mxu0 0
    %2216 = vmatprep.subr.bf16.mxu0 0
    %2217 = vmatpush1.bf16.msra.mxu0 %v2196
    %2218 = vmatprep.subr.bf16.mxu0 0
    %2219 = vmatpush1.bf16.msra.mxu0 %v2195
    %2220 = vmatprep.subr.bf16.mxu0 0
    %2221 = vmatpush1.bf16.msra.mxu0 %v2194
    %2222 = vmatprep.subr.bf16.mxu0 0
    %2223 = vmatpush1.bf16.msra.mxu0 %v2193
    %2224 = vmatprep.subr.bf16.mxu0 0
    %2225 = vmatpush2.bf16.msra.mxu0 0
    %2226 = vmatprep.subr.bf16.mxu0 0
    %2227 = vmatpush2.bf16.msra.mxu0 0
    %2228 = vmatprep.subr.bf16.mxu0 0
    %2229 = vmatpush2.bf16.msra.mxu0 0
    %2230 = vmatprep.subr.bf16.mxu0 0
    %2231 = vmatpush2.bf16.msra.mxu0 0
    %2232 = vmatprep.subr.bf16.mxu0 0
    %2233 = vmatpush2.bf16.msra.mxu0 0
    %2234 = vmatprep.subr.bf16.mxu0 0
    %2235 = vmatpush2.bf16.msra.mxu0 0
    %2236 = vmatprep.subr.bf16.mxu0 0
    %2237 = vmatpush2.bf16.msra.mxu0 0
    %2238 = vmatprep.subr.bf16.mxu0 0
    %2239 = vmatpush2.bf16.msra.mxu0 0
    %2240 = vmatprep.mubr.bf16.mxu0 0
    %2241 = vmatmul.mubr.bf16.gmra.mxu0 %v2206
    %v2242 = vpop.f32.mrf.mxu0
    %v2243 = vadd.f32 %v2203, %v2242
    %v2244 = vpop.f32.mrf.mxu0
    %v2245 = vpop.f32.mrf.mxu0
    %v2246 = vadd.f32 %v2203, %v2245
    %v2247 = vpop.f32.mrf.mxu0
    %2248 = vdwg.mxu0
    %v2249 = vadd.f32 %v2243, %v2091
    %v2250 = vadd.f32 %v2246, %v2092
    %v2251 = vsel %vm58, %v2249, 0.0
    %2252 = vadd.xlane.f32.xlu0 %v2251
    %v2253 = vpop.xlane.xlu0 %2252
    %v2254 = vsel %vm58, %v2250, 0.0
    %2255 = vadd.xlane.f32.xlu0 %v2254
    %v2256 = vpop.xlane.xlu0 %2255
    %v2257 = vmul.f32 %v2253, %v1400
    %v2258 = vmul.f32 %v2256, %v1400
    %v2259 = vsub.f32 %v2249, %v2257
    %v2260 = vsub.f32 %v2250, %v2258
    %v2261 = vmul.f32 %v2259, %v2259
    %v2262 = vmul.f32 %v2260, %v2260
    %v2263 = vsel %vm58, %v2261, 0.0
    %2264 = vadd.xlane.f32.xlu0 %v2263
    %v2265 = vpop.xlane.xlu0 %2264
    %v2266 = vsel %vm58, %v2262, 0.0
    %2267 = vadd.xlane.f32.xlu0 %v2266
    %v2268 = vpop.xlane.xlu0 %2267
    %v2269 = vmul.f32 %v2265, %v1400
    %v2270 = vmul.f32 %v2268, %v1400
    %v2271 = vadd.f32 %v2269, 1e-06
    %v2272 = vadd.f32 %v2270, 1e-06
    %v2273 = vrsqrt.pop %v2271
    %v2274 = vrsqrt.pop %v2272
    %v2275 = vmul.f32 %v2259, %v2273
    %v2276 = vmul.f32 %v2260, %v2274
    %v2277 = vlaneseq
    %v2278 = vshrl.u32 %v2277, 7
    %v2279 = vsub.s32 3, %v2278
    %v2280 = vrot.slane %v23, %v2279
    %2282 = vrot.lane.b32.xlu0 %v2280, 64
    %v2283 = vpop.permute.xlu0 %2282
    %v2285 = vmul.f32 %v2275, %v2283
    %v2286 = vmul.f32 %v2276, %v2283
    %v2287 = vlaneseq
    %v2288 = vshrl.u32 %v2287, 7
    %v2289 = vsub.s32 4, %v2288
    %v2290 = vrot.slane %v23, %v2289
    %2292 = vrot.lane.b32.xlu0 %v2290, 64
    %v2293 = vpop.permute.xlu0 %2292
    %v2295 = vadd.f32 %v2285, %v2293
    %v2296 = vadd.f32 %v2286, %v2293
    %2297 = vst.msk [vmem:[#allocation2] sm:$0xff] %vm58, %v2295
    %2298 = vst.msk [vmem:[#allocation2 + $0x8] sm:$0xff] %vm58, %v2296
    // Predicated region
    $region14: #{transformer_decoder_forward.1} parent=1 // pred_check
      _
    $region15: #{transformer_decoder_forward.1} parent=1 // pred_check_branch
      %2300 = sbr.rel (0) target = $region17
    $region16: #{transformer_decoder_forward.1} parent=1 // pred_region
      %s2302 = ssub.s32 256, 256
      %2303 = vsyncadd [#allocation3], %s2302
      %s2304 = sshll.u32 [#allocation2], 4
      %s2305 = int_to_ptr.vmem [resolvable:$true] %s2304
      %2310 = dma.vmem_to_hbm [thread:$0]  %s2305, 256, %s3, [#allocation3], 128, 128, 8
    $region17: #{transformer_decoder_forward.1} parent=1 // pred_fallthru
      _
    // Predicated region
    $region18: #{transformer_decoder_forward.1} parent=1 // pred_check
      _
    $region19: #{transformer_decoder_forward.1} parent=1 // pred_check_branch
      %2312 = sbr.rel (0) target = $region21
    $region20: #{transformer_decoder_forward.1} parent=1 // pred_region
      %2313 = dma.done [#allocation3], 256
    $region21: #{transformer_decoder_forward.1} parent=1 // pred_fallthru
      _
    %2314 = vsyncpa [#allocation3], 1

</llo_original>
